<compile_context>
chip_gen: v7x
topology: tpu7x:2x2x1
jax: 0.10.0
libtpu: 0.0.40
codegen_flags: <defaults>
</compile_context>

<pallas_src>
import jax
import jax.numpy as jnp
from jax import lax
from jax.experimental import pallas as pl
from jax.experimental.pallas import tpu as pltpu

_LANE = 128


# ----------------------------- fused Pallas kernel ---------------------------


def _make_fused_kernel(L, B, H, num_layers):
    """Fused BiLSTM(+FC) kernel for static (L, B, H, num_layers)."""
    G = 4 * H
    B2 = 2 * B

    def kernel(x_ref, *refs):
        # refs = (wih_packed, whh_packed, b_packed) x num_layers, fc_w, fc_b,
        #        out, xs_scratch, feats_scratch
        n_w = num_layers * 3
        w_refs = refs[:n_w]
        fcw_ref = refs[n_w]
        fcb_ref = refs[n_w + 1]
        out_ref = refs[n_w + 2]
        xs_scr = refs[n_w + 3]
        feats_scr = refs[n_w + 4]

        # Per-lane sigmoid-vs-tanh affine (PyTorch gate order i,f,g,o; g -> tanh).
        lane = lax.broadcasted_iota(jnp.int32, (1, G), 1)
        is_g = (lane >= 2 * H) & (lane < 3 * H)
        act_scale = jnp.where(is_g, 1.0, 0.5).astype(jnp.float32)
        act_off = jnp.where(is_g, 0.0, 0.5).astype(jnp.float32)

        # Row mask: forward chain = rows 0..B-1, backward chain = rows B..2B-1.
        row = lax.broadcasted_iota(jnp.int32, (B2, 1), 0)
        is_fwd = row < B

        xs_bf = x_ref[...]                      # [L*B, D_in] bf16, time-major
        for layer in range(num_layers):         # unrolled at trace time
            wih_ref = w_refs[layer * 3]         # [D_in, 8H] bf16 (fwd | bwd cols)
            whh_ref = w_refs[layer * 3 + 1]     # [H,    8H] bf16 (fwd | bwd cols)
            b_ref = w_refs[layer * 3 + 2]       # [1,    8H] f32  (b_ih + b_hh)

            # Hoisted input projection for BOTH directions in one matmul.
            gates_in = (jnp.dot(xs_bf, wih_ref[...],
                                preferred_element_type=jnp.float32)
                        + b_ref[...])           # [L*B, 8H] f32
            g_f = gates_in[:, :G]               # forward-direction pre-acts
            g_b = gates_in[:, G:]               # backward-direction pre-acts

            whh = whh_ref[...]
            h = jnp.zeros((B2, H), jnp.float32)
            c = jnp.zeros((B2, H), jnp.float32)
            last = layer == num_layers - 1
            for s in range(L):                  # fully unrolled, both dirs packed
                tf, tb = s, L - 1 - s           # fwd / bwd time index this step
                gin = jnp.concatenate(
                    [g_f[tf * B:(tf + 1) * B, :],
                     g_b[tb * B:(tb + 1) * B, :]], axis=0)     # [2B, 4H]
                if s == 0:
                    g = gin                     # h0 == 0 -> skip recurrent matmul
                else:
                    rec = jnp.dot(h.astype(jnp.bfloat16), whh,
                                  preferred_element_type=jnp.float32)  # [2B, 8H]
                    g = gin + jnp.where(is_fwd, rec[:, :G], rec[:, G:])
                # Single tanh over the full gate tile; sigmoid lanes = 0.5*t + 0.5
                # (the 0.5 input prescale is baked into the weights at pack time).
                act = jnp.tanh(g) * act_scale + act_off
                i_g = act[:, 0 * H:1 * H]
                f_g = act[:, 1 * H:2 * H]
                g_g = act[:, 2 * H:3 * H]
                o_g = act[:, 3 * H:4 * H]
                c = f_g * c + i_g * g_g
                h = o_g * jnp.tanh(c)
                h_f = h[:B, :]
                h_b = h[B:, :]
                if last:
                    # nn.Flatten order: per timestep forward H then backward H.
                    feats_scr[:, tf * 2 * H:tf * 2 * H + H] = h_f
                    feats_scr[:, tb * 2 * H + H:(tb + 1) * 2 * H] = h_b
                else:
                    xs_scr[tf * B:(tf + 1) * B, 0:H] = h_f
                    xs_scr[tb * B:(tb + 1) * B, H:2 * H] = h_b
            if not last:
                xs_bf = xs_scr[...].astype(jnp.bfloat16)   # next layer's input

        # Fused classifier head; class dim pre-padded to 128 -> lane-dense store.
        feats = feats_scr[...].astype(jnp.bfloat16)        # [B, L*2H]
        out_ref[...] = (jnp.dot(feats, fcw_ref[...],
                                preferred_element_type=jnp.float32)
                        + fcb_ref[...])

    return kernel


# ------------------------------ params & packing ------------------------------


def _prescale_gate_cols(arr, H):
    """Scale i/f/o gate columns (last dim, PyTorch order i,f,g,o) by 0.5 so the
    kernel can evaluate sigmoid(x) = 0.5*(1 + tanh(x/2)) with a single tanh."""
    scale = jnp.concatenate([jnp.full((2 * H,), 0.5, jnp.float32),
                             jnp.ones((H,), jnp.float32),
                             jnp.full((H,), 0.5, jnp.float32)])
    return arr * scale


def init_params(key, length, token_size, hidden_size, num_layers, num_classes):
    """Deterministic synthetic params in PyTorch nn.LSTM / nn.Linear layout."""
    H = hidden_size
    params = {"lstm": [], "fc": {}, "H": H, "num_layers": num_layers,
              "num_classes": num_classes, "length": length,
              "token_size": token_size}
    k_lstm = 1.0 / jnp.sqrt(jnp.float32(H))
    keys = jax.random.split(key, num_layers * 2 * 4 + 2)
    ki = 0
    for layer in range(num_layers):
        in_size = token_size if layer == 0 else 2 * H
        dirs = []
        for _d in range(2):  # forward, backward
            w_ih = jax.random.uniform(keys[ki], (4 * H, in_size), jnp.float32,
                                      -k_lstm, k_lstm); ki += 1
            w_hh = jax.random.uniform(keys[ki], (4 * H, H), jnp.float32,
                                      -k_lstm, k_lstm); ki += 1
            b_ih = jax.random.uniform(keys[ki], (4 * H,), jnp.float32,
                                      -k_lstm, k_lstm); ki += 1
            b_hh = jax.random.uniform(keys[ki], (4 * H,), jnp.float32,
                                      -k_lstm, k_lstm); ki += 1
            dirs.append({"w_ih": w_ih, "w_hh": w_hh, "b": b_ih + b_hh})
        params["lstm"].append(dirs)
    fan_in = length * 2 * H
    k_fc = 1.0 / jnp.sqrt(jnp.float32(fan_in))
    params["fc"]["w"] = jax.random.uniform(keys[ki], (num_classes, fan_in),
                                           jnp.float32, -k_fc, k_fc); ki += 1
    params["fc"]["b"] = jax.random.uniform(keys[ki], (num_classes,), jnp.float32,
                                           -k_fc, k_fc)
    return params


def pack_params(params):
    """Kernel-ready operands: direction-packed, sigmoid-prescaled, bf16."""
    H = params["H"]
    flat = []
    for layer in params["lstm"]:
        wih_cols, whh_cols, b_cols = [], [], []
        for p in layer:  # forward then backward -> column halves
            wih_cols.append(_prescale_gate_cols(p["w_ih"].T, H))   # [Din, 4H]
            whh_cols.append(_prescale_gate_cols(p["w_hh"].T, H))   # [H,   4H]
            b_cols.append(_prescale_gate_cols(p["b"], H))          # [4H]
        wih = jnp.concatenate(wih_cols, axis=1).astype(jnp.bfloat16)   # [Din, 8H]
        whh = jnp.concatenate(whh_cols, axis=1).astype(jnp.bfloat16)   # [H,   8H]
        b = jnp.concatenate(b_cols).reshape(1, -1).astype(jnp.float32)  # [1, 8H]
        flat += [wih, whh, b]
    C = params["num_classes"]
    c_pad = ((C + _LANE - 1) // _LANE) * _LANE
    w_t = params["fc"]["w"].T                                          # [L*2H, C]
    fcw = jnp.pad(w_t, ((0, 0), (0, c_pad - C))).astype(jnp.bfloat16)
    fcb = jnp.pad(params["fc"]["b"], (0, c_pad - C)).reshape(1, -1)
    fcb = fcb.astype(jnp.float32)
    return flat, fcw, fcb, c_pad


# --------------------------------- wrapper ------------------------------------


def rnn_cls_forward(params, X, labels=None):
    """Forward pass of RNNCLSModel. X: [B, L, token_size] float32."""
    B, L, D = X.shape
    H = params["H"]
    num_layers = params["num_layers"]
    C = params["num_classes"]

    # embed_layer = nn.Identity(); time-major flattened [L*B, D] once in XLA.
    x_flat = jnp.transpose(X, (1, 0, 2)).reshape(L * B, D).astype(jnp.bfloat16)
    flat_w, fcw, fcb, c_pad = pack_params(params)
    operands = [x_flat] + flat_w + [fcw, fcb]

    # Advisory cost estimate so XLA schedules the surrounding glue correctly.
    flops = 0
    for layer in range(num_layers):
        din = D if layer == 0 else 2 * H
        flops += 2 * (L * B) * din * (8 * H)          # input projection (both dirs)
        flops += 2 * (L - 1) * (2 * B) * H * (8 * H)  # recurrent matmuls
    flops += 2 * B * (L * 2 * H) * c_pad              # classifier head
    transc = num_layers * L * (2 * B) * (5 * H)       # tanh(gates) + tanh(c)
    bytes_accessed = sum(int(a.size) * a.dtype.itemsize for a in operands)
    bytes_accessed += B * c_pad * 4

    kernel = _make_fused_kernel(L, B, H, num_layers)
    vmem = pl.BlockSpec(memory_space=pltpu.MemorySpace.VMEM)
    logits_pad = pl.pallas_call(
        kernel,
        out_shape=jax.ShapeDtypeStruct((B, c_pad), jnp.float32),
        in_specs=[vmem] * len(operands),
        out_specs=vmem,
        scratch_shapes=[pltpu.VMEM((L * B, 2 * H), jnp.float32),   # next-layer xs
                        pltpu.VMEM((B, L * 2 * H), jnp.float32)],  # FC features
        compiler_params=pltpu.CompilerParams(vmem_limit_bytes=32 * 1024 * 1024),
        cost_estimate=pl.CostEstimate(flops=int(flops),
                                      transcendentals=int(transc),
                                      bytes_accessed=int(bytes_accessed)),
    )(*operands)
    logits = logits_pad[:, :C]

    outputs = (logits,)
    if labels is not None:
        # nn.CrossEntropyLoss (mean reduction) -- cheap glue, plain JAX, f32.
        logp = jax.nn.log_softmax(logits, axis=-1)
        loss = -jnp.mean(jnp.take_along_axis(logp, labels[:, None], axis=-1))
        outputs = (loss,) + outputs
    return outputs


# ------------------------- pure-JAX reference (sanity) ------------------------


def _reference_forward(params, X):
    B, L, _ = X.shape
    H = params["H"]
    x = jnp.transpose(X.astype(jnp.float32), (1, 0, 2))  # [L, B, D]
    for layer in params["lstm"]:
        outs = []
        for d, p in enumerate(layer):
            seq = x if d == 0 else x[::-1]
            w_ih_t, w_hh_t, b = p["w_ih"].T, p["w_hh"].T, p["b"]

            def step(carry, x_t, w_ih_t=w_ih_t, w_hh_t=w_hh_t, b=b):
                h, c = carry
                g = x_t @ w_ih_t + h @ w_hh_t + b
                i = jax.nn.sigmoid(g[:, :H])
                f = jax.nn.sigmoid(g[:, H:2 * H])
                gg = jnp.tanh(g[:, 2 * H:3 * H])
                o = jax.nn.sigmoid(g[:, 3 * H:])
                c = f * c + i * gg
                h = o * jnp.tanh(c)
                return (h, c), h

            init = (jnp.zeros((B, H), jnp.float32), jnp.zeros((B, H), jnp.float32))
            _, ys = lax.scan(step, init, seq)
            if d == 1:
                ys = ys[::-1]
            outs.append(ys)
        x = jnp.concatenate(outs, axis=-1)
    feats = jnp.transpose(x, (1, 0, 2)).reshape(B, -1)
    return feats @ params["fc"]["w"].T + params["fc"]["b"]


# ---------------------------------- main --------------------------------------

if __name__ == "__main__":
    B = 2            # batch
    L = 8            # sequence length
    TOKEN_SIZE = 16  # token_size == embed_size (Identity embedding)
    H = 32           # hidden_size
    NUM_LAYERS = 2
    NUM_CLASSES = 4

    root = jax.random.PRNGKey(0)
    k_params, k_x, k_lbl = jax.random.split(root, 3)

    params = init_params(k_params, L, TOKEN_SIZE, H, NUM_LAYERS, NUM_CLASSES)
    X = jax.random.normal(k_x, (B, L, TOKEN_SIZE), jnp.float32)
    labels = jax.random.randint(k_lbl, (B,), 0, NUM_CLASSES)

    (logits,) = rnn_cls_forward(params, X)
    loss, logits2 = rnn_cls_forward(params, X, labels)

    jax.block_until_ready(logits)
    jax.block_until_ready(loss)

    assert logits.shape == (B, NUM_CLASSES)
    assert logits2.shape == (B, NUM_CLASSES)
    assert loss.shape == ()
    assert bool(jnp.all(jnp.isfinite(logits)))

    # Sanity check against a pure-JAX f32 reference of the same math
    # (kernel uses bf16 MXU inputs with f32 accumulation -> slightly looser tol).
    ref_logits = jax.block_until_ready(_reference_forward(params, X))
    assert float(jnp.max(jnp.abs(logits - ref_logits))) < 2e-2

    print("KERNEL_OK")
</pallas_src>

<mosaic_0001>
module attributes {stable_mosaic.version = 11 : i64} {
  func.func @kernel(%arg0: memref<16x16xbf16, #tpu.memory_space<vmem>>, %arg1: memref<16x256xbf16, #tpu.memory_space<vmem>>, %arg2: memref<32x256xbf16, #tpu.memory_space<vmem>>, %arg3: memref<1x256xf32, #tpu.memory_space<vmem>>, %arg4: memref<64x256xbf16, #tpu.memory_space<vmem>>, %arg5: memref<32x256xbf16, #tpu.memory_space<vmem>>, %arg6: memref<1x256xf32, #tpu.memory_space<vmem>>, %arg7: memref<512x128xbf16, #tpu.memory_space<vmem>>, %arg8: memref<1x128xf32, #tpu.memory_space<vmem>>, %arg9: memref<2x128xf32, #tpu.memory_space<vmem>>, %arg10: memref<16x64xf32, #tpu.memory_space<vmem>>, %arg11: memref<2x512xf32, #tpu.memory_space<vmem>>) attributes {dimension_semantics = [], scalar_prefetch = 0 : i64, scratch_operands = 2 : i64, tpu.core_type = #tpu.core_type<tc>} {
    %0 = tpu.iota {dimensions = array<i32: 1>} : vector<1x128xi32>
    %c64_i32 = arith.constant 64 : i32
    %1 = vector.broadcast %c64_i32 : i32 to vector<1x128xi32>
    %2 = arith.cmpi sge, %0, %1 : vector<1x128xi32>
    %c96_i32 = arith.constant 96 : i32
    %3 = vector.broadcast %c96_i32 : i32 to vector<1x128xi32>
    %4 = arith.cmpi slt, %0, %3 : vector<1x128xi32>
    %5 = arith.andi %2, %4 : vector<1x128xi1>
    %cst = arith.constant 1.000000e+00 : f32
    %cst_0 = arith.constant 5.000000e-01 : f32
    %6 = vector.broadcast %cst : f32 to vector<1x128xf32>
    %7 = vector.broadcast %cst_0 : f32 to vector<1x128xf32>
    %8 = arith.select %5, %6, %7 : vector<1x128xi1>, vector<1x128xf32>
    %cst_1 = arith.constant 0.000000e+00 : f32
    %cst_2 = arith.constant 5.000000e-01 : f32
    %9 = vector.broadcast %cst_1 : f32 to vector<1x128xf32>
    %10 = vector.broadcast %cst_2 : f32 to vector<1x128xf32>
    %11 = arith.select %5, %9, %10 : vector<1x128xi1>, vector<1x128xf32>
    %12 = tpu.iota {dimensions = array<i32: 0>} : vector<4x1xi32>
    %c2_i32 = arith.constant 2 : i32
    %13 = vector.broadcast %c2_i32 : i32 to vector<4x1xi32>
    %14 = arith.cmpi slt, %12, %13 : vector<4x1xi32>
    %c0 = arith.constant 0 : index
    %c0_3 = arith.constant 0 : index
    %15 = vector.load %arg0[%c0, %c0_3] : memref<16x16xbf16, #tpu.memory_space<vmem>>, vector<16x16xbf16>
    %c0_4 = arith.constant 0 : index
    %c0_5 = arith.constant 0 : index
    %16 = vector.load %arg1[%c0_4, %c0_5] : memref<16x256xbf16, #tpu.memory_space<vmem>>, vector<16x256xbf16>
    %cst_6 = arith.constant dense<0.000000e+00> : vector<16x256xf32>
    %17 = tpu.matmul %15, %16, %cst_6 {dimension_numbers = #tpu.dot_dimension_numbers<[1], [0], [0], [1], [0, 0, 1, 1], [], []>} : vector<16x16xbf16>, vector<16x256xbf16>, vector<16x256xf32> -> vector<16x256xf32>
    %c0_7 = arith.constant 0 : index
    %c0_8 = arith.constant 0 : index
    %18 = vector.load %arg3[%c0_7, %c0_8] : memref<1x256xf32, #tpu.memory_space<vmem>>, vector<1x256xf32>
    %19 = vector.broadcast %18 : vector<1x256xf32> to vector<16x256xf32>
    %20 = arith.addf %17, %19 : vector<16x256xf32>
    %21 = vector.extract_strided_slice %20 {offsets = [0, 0], sizes = [16, 128], strides = [1, 1]} : vector<16x256xf32> to vector<16x128xf32>
    %22 = vector.extract_strided_slice %20 {offsets = [0, 128], sizes = [16, 128], strides = [1, 1]} : vector<16x256xf32> to vector<16x128xf32>
    %c0_9 = arith.constant 0 : index
    %c0_10 = arith.constant 0 : index
    %23 = vector.load %arg2[%c0_9, %c0_10] : memref<32x256xbf16, #tpu.memory_space<vmem>>, vector<32x256xbf16>
    %cst_11 = arith.constant 0.000000e+00 : f32
    %24 = vector.broadcast %cst_11 : f32 to vector<4x32xf32>
    %25 = vector.extract_strided_slice %21 {offsets = [0, 0], sizes = [2, 128], strides = [1, 1]} : vector<16x128xf32> to vector<2x128xf32>
    %26 = vector.extract_strided_slice %22 {offsets = [14, 0], sizes = [2, 128], strides = [1, 1]} : vector<16x128xf32> to vector<2x128xf32>
    %27 = tpu.concatenate %25, %26 in 0 : vector<2x128xf32>, vector<2x128xf32> -> vector<4x128xf32>
    %28 = math.tanh %27 : vector<4x128xf32>
    %29 = vector.broadcast %8 : vector<1x128xf32> to vector<4x128xf32>
    %30 = arith.mulf %28, %29 : vector<4x128xf32>
    %31 = vector.broadcast %11 : vector<1x128xf32> to vector<4x128xf32>
    %32 = arith.addf %30, %31 : vector<4x128xf32>
    %33 = vector.extract_strided_slice %32 {offsets = [0, 0], sizes = [4, 32], strides = [1, 1]} : vector<4x128xf32> to vector<4x32xf32>
    %34 = vector.extract_strided_slice %32 {offsets = [0, 32], sizes = [4, 32], strides = [1, 1]} : vector<4x128xf32> to vector<4x32xf32>
    %35 = vector.extract_strided_slice %32 {offsets = [0, 64], sizes = [4, 32], strides = [1, 1]} : vector<4x128xf32> to vector<4x32xf32>
    %36 = vector.extract_strided_slice %32 {offsets = [0, 96], sizes = [4, 32], strides = [1, 1]} : vector<4x128xf32> to vector<4x32xf32>
    %37 = arith.mulf %34, %24 : vector<4x32xf32>
    %38 = arith.mulf %33, %35 : vector<4x32xf32>
    %39 = arith.addf %37, %38 : vector<4x32xf32>
    %40 = math.tanh %39 : vector<4x32xf32>
    %41 = arith.mulf %36, %40 : vector<4x32xf32>
    %42 = vector.extract_strided_slice %41 {offsets = [0, 0], sizes = [2, 32], strides = [1, 1]} : vector<4x32xf32> to vector<2x32xf32>
    %43 = vector.extract_strided_slice %41 {offsets = [2, 0], sizes = [2, 32], strides = [1, 1]} : vector<4x32xf32> to vector<2x32xf32>
    %c0_12 = arith.constant 0 : index
    %c0_13 = arith.constant 0 : index
    %44 = vector.load %arg10[%c0_12, %c0_13] : memref<16x64xf32, #tpu.memory_space<vmem>>, vector<2x32xf32>
    tpu.vector_store %arg10[%c0_12, %c0_13], %42 {strides = array<i32>} : memref<16x64xf32, #tpu.memory_space<vmem>>, vector<2x32xf32>,
    %c14 = arith.constant 14 : index
    %c32 = arith.constant 32 : index
    %45 = vector.load %arg10[%c14, %c32] : memref<16x64xf32, #tpu.memory_space<vmem>>, vector<2x32xf32>
    tpu.vector_store %arg10[%c14, %c32], %43 {strides = array<i32>} : memref<16x64xf32, #tpu.memory_space<vmem>>, vector<2x32xf32>,
    %46 = vector.extract_strided_slice %21 {offsets = [2, 0], sizes = [2, 128], strides = [1, 1]} : vector<16x128xf32> to vector<2x128xf32>
    %47 = vector.extract_strided_slice %22 {offsets = [12, 0], sizes = [2, 128], strides = [1, 1]} : vector<16x128xf32> to vector<2x128xf32>
    %48 = tpu.concatenate %46, %47 in 0 : vector<2x128xf32>, vector<2x128xf32> -> vector<4x128xf32>
    %49 = arith.truncf %41 : vector<4x32xf32> to vector<4x32xbf16>
    %cst_14 = arith.constant dense<0.000000e+00> : vector<4x256xf32>
    %50 = tpu.matmul %49, %23, %cst_14 {dimension_numbers = #tpu.dot_dimension_numbers<[1], [0], [0], [1], [0, 0, 1, 1], [], []>} : vector<4x32xbf16>, vector<32x256xbf16>, vector<4x256xf32> -> vector<4x256xf32>
    %51 = vector.extract_strided_slice %50 {offsets = [0, 0], sizes = [4, 128], strides = [1, 1]} : vector<4x256xf32> to vector<4x128xf32>
    %52 = vector.extract_strided_slice %50 {offsets = [0, 128], sizes = [4, 128], strides = [1, 1]} : vector<4x256xf32> to vector<4x128xf32>
    %53 = vector.shape_cast %14 : vector<4x1xi1> to vector<4x1xi1>
    %54 = vector.broadcast %53 : vector<4x1xi1> to vector<4x128xi1>
    %55 = arith.select %54, %51, %52 : vector<4x128xi1>, vector<4x128xf32>
    %56 = arith.addf %48, %55 : vector<4x128xf32>
    %57 = math.tanh %56 : vector<4x128xf32>
    %58 = vector.broadcast %8 : vector<1x128xf32> to vector<4x128xf32>
    %59 = arith.mulf %57, %58 : vector<4x128xf32>
    %60 = vector.broadcast %11 : vector<1x128xf32> to vector<4x128xf32>
    %61 = arith.addf %59, %60 : vector<4x128xf32>
    %62 = vector.extract_strided_slice %61 {offsets = [0, 0], sizes = [4, 32], strides = [1, 1]} : vector<4x128xf32> to vector<4x32xf32>
    %63 = vector.extract_strided_slice %61 {offsets = [0, 32], sizes = [4, 32], strides = [1, 1]} : vector<4x128xf32> to vector<4x32xf32>
    %64 = vector.extract_strided_slice %61 {offsets = [0, 64], sizes = [4, 32], strides = [1, 1]} : vector<4x128xf32> to vector<4x32xf32>
    %65 = vector.extract_strided_slice %61 {offsets = [0, 96], sizes = [4, 32], strides = [1, 1]} : vector<4x128xf32> to vector<4x32xf32>
    %66 = arith.mulf %63, %39 : vector<4x32xf32>
    %67 = arith.mulf %62, %64 : vector<4x32xf32>
    %68 = arith.addf %66, %67 : vector<4x32xf32>
    %69 = math.tanh %68 : vector<4x32xf32>
    %70 = arith.mulf %65, %69 : vector<4x32xf32>
    %71 = vector.extract_strided_slice %70 {offsets = [0, 0], sizes = [2, 32], strides = [1, 1]} : vector<4x32xf32> to vector<2x32xf32>
    %72 = vector.extract_strided_slice %70 {offsets = [2, 0], sizes = [2, 32], strides = [1, 1]} : vector<4x32xf32> to vector<2x32xf32>
    %c2 = arith.constant 2 : index
    %c0_15 = arith.constant 0 : index
    %73 = vector.load %arg10[%c2, %c0_15] : memref<16x64xf32, #tpu.memory_space<vmem>>, vector<2x32xf32>
    tpu.vector_store %arg10[%c2, %c0_15], %71 {strides = array<i32>} : memref<16x64xf32, #tpu.memory_space<vmem>>, vector<2x32xf32>,
    %c12 = arith.constant 12 : index
    %c32_16 = arith.constant 32 : index
    %74 = vector.load %arg10[%c12, %c32_16] : memref<16x64xf32, #tpu.memory_space<vmem>>, vector<2x32xf32>
    tpu.vector_store %arg10[%c12, %c32_16], %72 {strides = array<i32>} : memref<16x64xf32, #tpu.memory_space<vmem>>, vector<2x32xf32>,
    %75 = vector.extract_strided_slice %21 {offsets = [4, 0], sizes = [2, 128], strides = [1, 1]} : vector<16x128xf32> to vector<2x128xf32>
    %76 = vector.extract_strided_slice %22 {offsets = [10, 0], sizes = [2, 128], strides = [1, 1]} : vector<16x128xf32> to vector<2x128xf32>
    %77 = tpu.concatenate %75, %76 in 0 : vector<2x128xf32>, vector<2x128xf32> -> vector<4x128xf32>
    %78 = arith.truncf %70 : vector<4x32xf32> to vector<4x32xbf16>
    %cst_17 = arith.constant dense<0.000000e+00> : vector<4x256xf32>
    %79 = tpu.matmul %78, %23, %cst_17 {dimension_numbers = #tpu.dot_dimension_numbers<[1], [0], [0], [1], [0, 0, 1, 1], [], []>} : vector<4x32xbf16>, vector<32x256xbf16>, vector<4x256xf32> -> vector<4x256xf32>
    %80 = vector.extract_strided_slice %79 {offsets = [0, 0], sizes = [4, 128], strides = [1, 1]} : vector<4x256xf32> to vector<4x128xf32>
    %81 = vector.extract_strided_slice %79 {offsets = [0, 128], sizes = [4, 128], strides = [1, 1]} : vector<4x256xf32> to vector<4x128xf32>
    %82 = vector.shape_cast %14 : vector<4x1xi1> to vector<4x1xi1>
    %83 = vector.broadcast %82 : vector<4x1xi1> to vector<4x128xi1>
    %84 = arith.select %83, %80, %81 : vector<4x128xi1>, vector<4x128xf32>
    %85 = arith.addf %77, %84 : vector<4x128xf32>
    %86 = math.tanh %85 : vector<4x128xf32>
    %87 = vector.broadcast %8 : vector<1x128xf32> to vector<4x128xf32>
    %88 = arith.mulf %86, %87 : vector<4x128xf32>
    %89 = vector.broadcast %11 : vector<1x128xf32> to vector<4x128xf32>
    %90 = arith.addf %88, %89 : vector<4x128xf32>
    %91 = vector.extract_strided_slice %90 {offsets = [0, 0], sizes = [4, 32], strides = [1, 1]} : vector<4x128xf32> to vector<4x32xf32>
    %92 = vector.extract_strided_slice %90 {offsets = [0, 32], sizes = [4, 32], strides = [1, 1]} : vector<4x128xf32> to vector<4x32xf32>
    %93 = vector.extract_strided_slice %90 {offsets = [0, 64], sizes = [4, 32], strides = [1, 1]} : vector<4x128xf32> to vector<4x32xf32>
    %94 = vector.extract_strided_slice %90 {offsets = [0, 96], sizes = [4, 32], strides = [1, 1]} : vector<4x128xf32> to vector<4x32xf32>
    %95 = arith.mulf %92, %68 : vector<4x32xf32>
    %96 = arith.mulf %91, %93 : vector<4x32xf32>
    %97 = arith.addf %95, %96 : vector<4x32xf32>
    %98 = math.tanh %97 : vector<4x32xf32>
    %99 = arith.mulf %94, %98 : vector<4x32xf32>
    %100 = vector.extract_strided_slice %99 {offsets = [0, 0], sizes = [2, 32], strides = [1, 1]} : vector<4x32xf32> to vector<2x32xf32>
    %101 = vector.extract_strided_slice %99 {offsets = [2, 0], sizes = [2, 32], strides = [1, 1]} : vector<4x32xf32> to vector<2x32xf32>
    %c4 = arith.constant 4 : index
    %c0_18 = arith.constant 0 : index
    %102 = vector.load %arg10[%c4, %c0_18] : memref<16x64xf32, #tpu.memory_space<vmem>>, vector<2x32xf32>
    tpu.vector_store %arg10[%c4, %c0_18], %100 {strides = array<i32>} : memref<16x64xf32, #tpu.memory_space<vmem>>, vector<2x32xf32>,
    %c10 = arith.constant 10 : index
    %c32_19 = arith.constant 32 : index
    %103 = vector.load %arg10[%c10, %c32_19] : memref<16x64xf32, #tpu.memory_space<vmem>>, vector<2x32xf32>
    tpu.vector_store %arg10[%c10, %c32_19], %101 {strides = array<i32>} : memref<16x64xf32, #tpu.memory_space<vmem>>, vector<2x32xf32>,
    %104 = vector.extract_strided_slice %21 {offsets = [6, 0], sizes = [2, 128], strides = [1, 1]} : vector<16x128xf32> to vector<2x128xf32>
    %105 = vector.extract_strided_slice %22 {offsets = [8, 0], sizes = [2, 128], strides = [1, 1]} : vector<16x128xf32> to vector<2x128xf32>
    %106 = tpu.concatenate %104, %105 in 0 : vector<2x128xf32>, vector<2x128xf32> -> vector<4x128xf32>
    %107 = arith.truncf %99 : vector<4x32xf32> to vector<4x32xbf16>
    %cst_20 = arith.constant dense<0.000000e+00> : vector<4x256xf32>
    %108 = tpu.matmul %107, %23, %cst_20 {dimension_numbers = #tpu.dot_dimension_numbers<[1], [0], [0], [1], [0, 0, 1, 1], [], []>} : vector<4x32xbf16>, vector<32x256xbf16>, vector<4x256xf32> -> vector<4x256xf32>
    %109 = vector.extract_strided_slice %108 {offsets = [0, 0], sizes = [4, 128], strides = [1, 1]} : vector<4x256xf32> to vector<4x128xf32>
    %110 = vector.extract_strided_slice %108 {offsets = [0, 128], sizes = [4, 128], strides = [1, 1]} : vector<4x256xf32> to vector<4x128xf32>
    %111 = vector.shape_cast %14 : vector<4x1xi1> to vector<4x1xi1>
    %112 = vector.broadcast %111 : vector<4x1xi1> to vector<4x128xi1>
    %113 = arith.select %112, %109, %110 : vector<4x128xi1>, vector<4x128xf32>
    %114 = arith.addf %106, %113 : vector<4x128xf32>
    %115 = math.tanh %114 : vector<4x128xf32>
    %116 = vector.broadcast %8 : vector<1x128xf32> to vector<4x128xf32>
    %117 = arith.mulf %115, %116 : vector<4x128xf32>
    %118 = vector.broadcast %11 : vector<1x128xf32> to vector<4x128xf32>
    %119 = arith.addf %117, %118 : vector<4x128xf32>
    %120 = vector.extract_strided_slice %119 {offsets = [0, 0], sizes = [4, 32], strides = [1, 1]} : vector<4x128xf32> to vector<4x32xf32>
    %121 = vector.extract_strided_slice %119 {offsets = [0, 32], sizes = [4, 32], strides = [1, 1]} : vector<4x128xf32> to vector<4x32xf32>
    %122 = vector.extract_strided_slice %119 {offsets = [0, 64], sizes = [4, 32], strides = [1, 1]} : vector<4x128xf32> to vector<4x32xf32>
    %123 = vector.extract_strided_slice %119 {offsets = [0, 96], sizes = [4, 32], strides = [1, 1]} : vector<4x128xf32> to vector<4x32xf32>
    %124 = arith.mulf %121, %97 : vector<4x32xf32>
    %125 = arith.mulf %120, %122 : vector<4x32xf32>
    %126 = arith.addf %124, %125 : vector<4x32xf32>
    %127 = math.tanh %126 : vector<4x32xf32>
    %128 = arith.mulf %123, %127 : vector<4x32xf32>
    %129 = vector.extract_strided_slice %128 {offsets = [0, 0], sizes = [2, 32], strides = [1, 1]} : vector<4x32xf32> to vector<2x32xf32>
    %130 = vector.extract_strided_slice %128 {offsets = [2, 0], sizes = [2, 32], strides = [1, 1]} : vector<4x32xf32> to vector<2x32xf32>
    %c6 = arith.constant 6 : index
    %c0_21 = arith.constant 0 : index
    %131 = vector.load %arg10[%c6, %c0_21] : memref<16x64xf32, #tpu.memory_space<vmem>>, vector<2x32xf32>
    tpu.vector_store %arg10[%c6, %c0_21], %129 {strides = array<i32>} : memref<16x64xf32, #tpu.memory_space<vmem>>, vector<2x32xf32>,
    %c8 = arith.constant 8 : index
    %c32_22 = arith.constant 32 : index
    %132 = vector.load %arg10[%c8, %c32_22] : memref<16x64xf32, #tpu.memory_space<vmem>>, vector<2x32xf32>
    tpu.vector_store %arg10[%c8, %c32_22], %130 {strides = array<i32>} : memref<16x64xf32, #tpu.memory_space<vmem>>, vector<2x32xf32>,
    %133 = vector.extract_strided_slice %21 {offsets = [8, 0], sizes = [2, 128], strides = [1, 1]} : vector<16x128xf32> to vector<2x128xf32>
    %134 = vector.extract_strided_slice %22 {offsets = [6, 0], sizes = [2, 128], strides = [1, 1]} : vector<16x128xf32> to vector<2x128xf32>
    %135 = tpu.concatenate %133, %134 in 0 : vector<2x128xf32>, vector<2x128xf32> -> vector<4x128xf32>
    %136 = arith.truncf %128 : vector<4x32xf32> to vector<4x32xbf16>
    %cst_23 = arith.constant dense<0.000000e+00> : vector<4x256xf32>
    %137 = tpu.matmul %136, %23, %cst_23 {dimension_numbers = #tpu.dot_dimension_numbers<[1], [0], [0], [1], [0, 0, 1, 1], [], []>} : vector<4x32xbf16>, vector<32x256xbf16>, vector<4x256xf32> -> vector<4x256xf32>
    %138 = vector.extract_strided_slice %137 {offsets = [0, 0], sizes = [4, 128], strides = [1, 1]} : vector<4x256xf32> to vector<4x128xf32>
    %139 = vector.extract_strided_slice %137 {offsets = [0, 128], sizes = [4, 128], strides = [1, 1]} : vector<4x256xf32> to vector<4x128xf32>
    %140 = vector.shape_cast %14 : vector<4x1xi1> to vector<4x1xi1>
    %141 = vector.broadcast %140 : vector<4x1xi1> to vector<4x128xi1>
    %142 = arith.select %141, %138, %139 : vector<4x128xi1>, vector<4x128xf32>
    %143 = arith.addf %135, %142 : vector<4x128xf32>
    %144 = math.tanh %143 : vector<4x128xf32>
    %145 = vector.broadcast %8 : vector<1x128xf32> to vector<4x128xf32>
    %146 = arith.mulf %144, %145 : vector<4x128xf32>
    %147 = vector.broadcast %11 : vector<1x128xf32> to vector<4x128xf32>
    %148 = arith.addf %146, %147 : vector<4x128xf32>
    %149 = vector.extract_strided_slice %148 {offsets = [0, 0], sizes = [4, 32], strides = [1, 1]} : vector<4x128xf32> to vector<4x32xf32>
    %150 = vector.extract_strided_slice %148 {offsets = [0, 32], sizes = [4, 32], strides = [1, 1]} : vector<4x128xf32> to vector<4x32xf32>
    %151 = vector.extract_strided_slice %148 {offsets = [0, 64], sizes = [4, 32], strides = [1, 1]} : vector<4x128xf32> to vector<4x32xf32>
    %152 = vector.extract_strided_slice %148 {offsets = [0, 96], sizes = [4, 32], strides = [1, 1]} : vector<4x128xf32> to vector<4x32xf32>
    %153 = arith.mulf %150, %126 : vector<4x32xf32>
    %154 = arith.mulf %149, %151 : vector<4x32xf32>
    %155 = arith.addf %153, %154 : vector<4x32xf32>
    %156 = math.tanh %155 : vector<4x32xf32>
    %157 = arith.mulf %152, %156 : vector<4x32xf32>
    %158 = vector.extract_strided_slice %157 {offsets = [0, 0], sizes = [2, 32], strides = [1, 1]} : vector<4x32xf32> to vector<2x32xf32>
    %159 = vector.extract_strided_slice %157 {offsets = [2, 0], sizes = [2, 32], strides = [1, 1]} : vector<4x32xf32> to vector<2x32xf32>
    %c8_24 = arith.constant 8 : index
    %c0_25 = arith.constant 0 : index
    %160 = vector.load %arg10[%c8_24, %c0_25] : memref<16x64xf32, #tpu.memory_space<vmem>>, vector<2x32xf32>
    tpu.vector_store %arg10[%c8_24, %c0_25], %158 {strides = array<i32>} : memref<16x64xf32, #tpu.memory_space<vmem>>, vector<2x32xf32>,
    %c6_26 = arith.constant 6 : index
    %c32_27 = arith.constant 32 : index
    %161 = vector.load %arg10[%c6_26, %c32_27] : memref<16x64xf32, #tpu.memory_space<vmem>>, vector<2x32xf32>
    tpu.vector_store %arg10[%c6_26, %c32_27], %159 {strides = array<i32>} : memref<16x64xf32, #tpu.memory_space<vmem>>, vector<2x32xf32>,
    %162 = vector.extract_strided_slice %21 {offsets = [10, 0], sizes = [2, 128], strides = [1, 1]} : vector<16x128xf32> to vector<2x128xf32>
    %163 = vector.extract_strided_slice %22 {offsets = [4, 0], sizes = [2, 128], strides = [1, 1]} : vector<16x128xf32> to vector<2x128xf32>
    %164 = tpu.concatenate %162, %163 in 0 : vector<2x128xf32>, vector<2x128xf32> -> vector<4x128xf32>
    %165 = arith.truncf %157 : vector<4x32xf32> to vector<4x32xbf16>
    %cst_28 = arith.constant dense<0.000000e+00> : vector<4x256xf32>
    %166 = tpu.matmul %165, %23, %cst_28 {dimension_numbers = #tpu.dot_dimension_numbers<[1], [0], [0], [1], [0, 0, 1, 1], [], []>} : vector<4x32xbf16>, vector<32x256xbf16>, vector<4x256xf32> -> vector<4x256xf32>
    %167 = vector.extract_strided_slice %166 {offsets = [0, 0], sizes = [4, 128], strides = [1, 1]} : vector<4x256xf32> to vector<4x128xf32>
    %168 = vector.extract_strided_slice %166 {offsets = [0, 128], sizes = [4, 128], strides = [1, 1]} : vector<4x256xf32> to vector<4x128xf32>
    %169 = vector.shape_cast %14 : vector<4x1xi1> to vector<4x1xi1>
    %170 = vector.broadcast %169 : vector<4x1xi1> to vector<4x128xi1>
    %171 = arith.select %170, %167, %168 : vector<4x128xi1>, vector<4x128xf32>
    %172 = arith.addf %164, %171 : vector<4x128xf32>
    %173 = math.tanh %172 : vector<4x128xf32>
    %174 = vector.broadcast %8 : vector<1x128xf32> to vector<4x128xf32>
    %175 = arith.mulf %173, %174 : vector<4x128xf32>
    %176 = vector.broadcast %11 : vector<1x128xf32> to vector<4x128xf32>
    %177 = arith.addf %175, %176 : vector<4x128xf32>
    %178 = vector.extract_strided_slice %177 {offsets = [0, 0], sizes = [4, 32], strides = [1, 1]} : vector<4x128xf32> to vector<4x32xf32>
    %179 = vector.extract_strided_slice %177 {offsets = [0, 32], sizes = [4, 32], strides = [1, 1]} : vector<4x128xf32> to vector<4x32xf32>
    %180 = vector.extract_strided_slice %177 {offsets = [0, 64], sizes = [4, 32], strides = [1, 1]} : vector<4x128xf32> to vector<4x32xf32>
    %181 = vector.extract_strided_slice %177 {offsets = [0, 96], sizes = [4, 32], strides = [1, 1]} : vector<4x128xf32> to vector<4x32xf32>
    %182 = arith.mulf %179, %155 : vector<4x32xf32>
    %183 = arith.mulf %178, %180 : vector<4x32xf32>
    %184 = arith.addf %182, %183 : vector<4x32xf32>
    %185 = math.tanh %184 : vector<4x32xf32>
    %186 = arith.mulf %181, %185 : vector<4x32xf32>
    %187 = vector.extract_strided_slice %186 {offsets = [0, 0], sizes = [2, 32], strides = [1, 1]} : vector<4x32xf32> to vector<2x32xf32>
    %188 = vector.extract_strided_slice %186 {offsets = [2, 0], sizes = [2, 32], strides = [1, 1]} : vector<4x32xf32> to vector<2x32xf32>
    %c10_29 = arith.constant 10 : index
    %c0_30 = arith.constant 0 : index
    %189 = vector.load %arg10[%c10_29, %c0_30] : memref<16x64xf32, #tpu.memory_space<vmem>>, vector<2x32xf32>
    tpu.vector_store %arg10[%c10_29, %c0_30], %187 {strides = array<i32>} : memref<16x64xf32, #tpu.memory_space<vmem>>, vector<2x32xf32>,
    %c4_31 = arith.constant 4 : index
    %c32_32 = arith.constant 32 : index
    %190 = vector.load %arg10[%c4_31, %c32_32] : memref<16x64xf32, #tpu.memory_space<vmem>>, vector<2x32xf32>
    tpu.vector_store %arg10[%c4_31, %c32_32], %188 {strides = array<i32>} : memref<16x64xf32, #tpu.memory_space<vmem>>, vector<2x32xf32>,
    %191 = vector.extract_strided_slice %21 {offsets = [12, 0], sizes = [2, 128], strides = [1, 1]} : vector<16x128xf32> to vector<2x128xf32>
    %192 = vector.extract_strided_slice %22 {offsets = [2, 0], sizes = [2, 128], strides = [1, 1]} : vector<16x128xf32> to vector<2x128xf32>
    %193 = tpu.concatenate %191, %192 in 0 : vector<2x128xf32>, vector<2x128xf32> -> vector<4x128xf32>
    %194 = arith.truncf %186 : vector<4x32xf32> to vector<4x32xbf16>
    %cst_33 = arith.constant dense<0.000000e+00> : vector<4x256xf32>
    %195 = tpu.matmul %194, %23, %cst_33 {dimension_numbers = #tpu.dot_dimension_numbers<[1], [0], [0], [1], [0, 0, 1, 1], [], []>} : vector<4x32xbf16>, vector<32x256xbf16>, vector<4x256xf32> -> vector<4x256xf32>
    %196 = vector.extract_strided_slice %195 {offsets = [0, 0], sizes = [4, 128], strides = [1, 1]} : vector<4x256xf32> to vector<4x128xf32>
    %197 = vector.extract_strided_slice %195 {offsets = [0, 128], sizes = [4, 128], strides = [1, 1]} : vector<4x256xf32> to vector<4x128xf32>
    %198 = vector.shape_cast %14 : vector<4x1xi1> to vector<4x1xi1>
    %199 = vector.broadcast %198 : vector<4x1xi1> to vector<4x128xi1>
    %200 = arith.select %199, %196, %197 : vector<4x128xi1>, vector<4x128xf32>
    %201 = arith.addf %193, %200 : vector<4x128xf32>
    %202 = math.tanh %201 : vector<4x128xf32>
    %203 = vector.broadcast %8 : vector<1x128xf32> to vector<4x128xf32>
    %204 = arith.mulf %202, %203 : vector<4x128xf32>
    %205 = vector.broadcast %11 : vector<1x128xf32> to vector<4x128xf32>
    %206 = arith.addf %204, %205 : vector<4x128xf32>
    %207 = vector.extract_strided_slice %206 {offsets = [0, 0], sizes = [4, 32], strides = [1, 1]} : vector<4x128xf32> to vector<4x32xf32>
    %208 = vector.extract_strided_slice %206 {offsets = [0, 32], sizes = [4, 32], strides = [1, 1]} : vector<4x128xf32> to vector<4x32xf32>
    %209 = vector.extract_strided_slice %206 {offsets = [0, 64], sizes = [4, 32], strides = [1, 1]} : vector<4x128xf32> to vector<4x32xf32>
    %210 = vector.extract_strided_slice %206 {offsets = [0, 96], sizes = [4, 32], strides = [1, 1]} : vector<4x128xf32> to vector<4x32xf32>
    %211 = arith.mulf %208, %184 : vector<4x32xf32>
    %212 = arith.mulf %207, %209 : vector<4x32xf32>
    %213 = arith.addf %211, %212 : vector<4x32xf32>
    %214 = math.tanh %213 : vector<4x32xf32>
    %215 = arith.mulf %210, %214 : vector<4x32xf32>
    %216 = vector.extract_strided_slice %215 {offsets = [0, 0], sizes = [2, 32], strides = [1, 1]} : vector<4x32xf32> to vector<2x32xf32>
    %217 = vector.extract_strided_slice %215 {offsets = [2, 0], sizes = [2, 32], strides = [1, 1]} : vector<4x32xf32> to vector<2x32xf32>
    %c12_34 = arith.constant 12 : index
    %c0_35 = arith.constant 0 : index
    %218 = vector.load %arg10[%c12_34, %c0_35] : memref<16x64xf32, #tpu.memory_space<vmem>>, vector<2x32xf32>
    tpu.vector_store %arg10[%c12_34, %c0_35], %216 {strides = array<i32>} : memref<16x64xf32, #tpu.memory_space<vmem>>, vector<2x32xf32>,
    %c2_36 = arith.constant 2 : index
    %c32_37 = arith.constant 32 : index
    %219 = vector.load %arg10[%c2_36, %c32_37] : memref<16x64xf32, #tpu.memory_space<vmem>>, vector<2x32xf32>
    tpu.vector_store %arg10[%c2_36, %c32_37], %217 {strides = array<i32>} : memref<16x64xf32, #tpu.memory_space<vmem>>, vector<2x32xf32>,
    %220 = vector.extract_strided_slice %21 {offsets = [14, 0], sizes = [2, 128], strides = [1, 1]} : vector<16x128xf32> to vector<2x128xf32>
    %221 = vector.extract_strided_slice %22 {offsets = [0, 0], sizes = [2, 128], strides = [1, 1]} : vector<16x128xf32> to vector<2x128xf32>
    %222 = tpu.concatenate %220, %221 in 0 : vector<2x128xf32>, vector<2x128xf32> -> vector<4x128xf32>
    %223 = arith.truncf %215 : vector<4x32xf32> to vector<4x32xbf16>
    %cst_38 = arith.constant dense<0.000000e+00> : vector<4x256xf32>
    %224 = tpu.matmul %223, %23, %cst_38 {dimension_numbers = #tpu.dot_dimension_numbers<[1], [0], [0], [1], [0, 0, 1, 1], [], []>} : vector<4x32xbf16>, vector<32x256xbf16>, vector<4x256xf32> -> vector<4x256xf32>
    %225 = vector.extract_strided_slice %224 {offsets = [0, 0], sizes = [4, 128], strides = [1, 1]} : vector<4x256xf32> to vector<4x128xf32>
    %226 = vector.extract_strided_slice %224 {offsets = [0, 128], sizes = [4, 128], strides = [1, 1]} : vector<4x256xf32> to vector<4x128xf32>
    %227 = vector.shape_cast %14 : vector<4x1xi1> to vector<4x1xi1>
    %228 = vector.broadcast %227 : vector<4x1xi1> to vector<4x128xi1>
    %229 = arith.select %228, %225, %226 : vector<4x128xi1>, vector<4x128xf32>
    %230 = arith.addf %222, %229 : vector<4x128xf32>
    %231 = math.tanh %230 : vector<4x128xf32>
    %232 = vector.broadcast %8 : vector<1x128xf32> to vector<4x128xf32>
    %233 = arith.mulf %231, %232 : vector<4x128xf32>
    %234 = vector.broadcast %11 : vector<1x128xf32> to vector<4x128xf32>
    %235 = arith.addf %233, %234 : vector<4x128xf32>
    %236 = vector.extract_strided_slice %235 {offsets = [0, 0], sizes = [4, 32], strides = [1, 1]} : vector<4x128xf32> to vector<4x32xf32>
    %237 = vector.extract_strided_slice %235 {offsets = [0, 32], sizes = [4, 32], strides = [1, 1]} : vector<4x128xf32> to vector<4x32xf32>
    %238 = vector.extract_strided_slice %235 {offsets = [0, 64], sizes = [4, 32], strides = [1, 1]} : vector<4x128xf32> to vector<4x32xf32>
    %239 = vector.extract_strided_slice %235 {offsets = [0, 96], sizes = [4, 32], strides = [1, 1]} : vector<4x128xf32> to vector<4x32xf32>
    %240 = arith.mulf %237, %213 : vector<4x32xf32>
    %241 = arith.mulf %236, %238 : vector<4x32xf32>
    %242 = arith.addf %240, %241 : vector<4x32xf32>
    %243 = math.tanh %242 : vector<4x32xf32>
    %244 = arith.mulf %239, %243 : vector<4x32xf32>
    %245 = vector.extract_strided_slice %244 {offsets = [0, 0], sizes = [2, 32], strides = [1, 1]} : vector<4x32xf32> to vector<2x32xf32>
    %246 = vector.extract_strided_slice %244 {offsets = [2, 0], sizes = [2, 32], strides = [1, 1]} : vector<4x32xf32> to vector<2x32xf32>
    %c14_39 = arith.constant 14 : index
    %c0_40 = arith.constant 0 : index
    %247 = vector.load %arg10[%c14_39, %c0_40] : memref<16x64xf32, #tpu.memory_space<vmem>>, vector<2x32xf32>
    tpu.vector_store %arg10[%c14_39, %c0_40], %245 {strides = array<i32>} : memref<16x64xf32, #tpu.memory_space<vmem>>, vector<2x32xf32>,
    %c0_41 = arith.constant 0 : index
    %c32_42 = arith.constant 32 : index
    %248 = vector.load %arg10[%c0_41, %c32_42] : memref<16x64xf32, #tpu.memory_space<vmem>>, vector<2x32xf32>
    tpu.vector_store %arg10[%c0_41, %c32_42], %246 {strides = array<i32>} : memref<16x64xf32, #tpu.memory_space<vmem>>, vector<2x32xf32>,
    %c0_43 = arith.constant 0 : index
    %c0_44 = arith.constant 0 : index
    %249 = vector.load %arg10[%c0_43, %c0_44] : memref<16x64xf32, #tpu.memory_space<vmem>>, vector<16x64xf32>
    %250 = arith.truncf %249 : vector<16x64xf32> to vector<16x64xbf16>
    %c0_45 = arith.constant 0 : index
    %c0_46 = arith.constant 0 : index
    %251 = vector.load %arg4[%c0_45, %c0_46] : memref<64x256xbf16, #tpu.memory_space<vmem>>, vector<64x256xbf16>
    %cst_47 = arith.constant dense<0.000000e+00> : vector<16x256xf32>
    %252 = tpu.matmul %250, %251, %cst_47 {dimension_numbers = #tpu.dot_dimension_numbers<[1], [0], [0], [1], [0, 0, 1, 1], [], []>} : vector<16x64xbf16>, vector<64x256xbf16>, vector<16x256xf32> -> vector<16x256xf32>
    %c0_48 = arith.constant 0 : index
    %c0_49 = arith.constant 0 : index
    %253 = vector.load %arg6[%c0_48, %c0_49] : memref<1x256xf32, #tpu.memory_space<vmem>>, vector<1x256xf32>
    %254 = vector.broadcast %253 : vector<1x256xf32> to vector<16x256xf32>
    %255 = arith.addf %252, %254 : vector<16x256xf32>
    %256 = vector.extract_strided_slice %255 {offsets = [0, 0], sizes = [16, 128], strides = [1, 1]} : vector<16x256xf32> to vector<16x128xf32>
    %257 = vector.extract_strided_slice %255 {offsets = [0, 128], sizes = [16, 128], strides = [1, 1]} : vector<16x256xf32> to vector<16x128xf32>
    %c0_50 = arith.constant 0 : index
    %c0_51 = arith.constant 0 : index
    %258 = vector.load %arg5[%c0_50, %c0_51] : memref<32x256xbf16, #tpu.memory_space<vmem>>, vector<32x256xbf16>
    %cst_52 = arith.constant 0.000000e+00 : f32
    %259 = vector.broadcast %cst_52 : f32 to vector<4x32xf32>
    %260 = vector.extract_strided_slice %256 {offsets = [0, 0], sizes = [2, 128], strides = [1, 1]} : vector<16x128xf32> to vector<2x128xf32>
    %261 = vector.extract_strided_slice %257 {offsets = [14, 0], sizes = [2, 128], strides = [1, 1]} : vector<16x128xf32> to vector<2x128xf32>
    %262 = tpu.concatenate %260, %261 in 0 : vector<2x128xf32>, vector<2x128xf32> -> vector<4x128xf32>
    %263 = math.tanh %262 : vector<4x128xf32>
    %264 = vector.broadcast %8 : vector<1x128xf32> to vector<4x128xf32>
    %265 = arith.mulf %263, %264 : vector<4x128xf32>
    %266 = vector.broadcast %11 : vector<1x128xf32> to vector<4x128xf32>
    %267 = arith.addf %265, %266 : vector<4x128xf32>
    %268 = vector.extract_strided_slice %267 {offsets = [0, 0], sizes = [4, 32], strides = [1, 1]} : vector<4x128xf32> to vector<4x32xf32>
    %269 = vector.extract_strided_slice %267 {offsets = [0, 32], sizes = [4, 32], strides = [1, 1]} : vector<4x128xf32> to vector<4x32xf32>
    %270 = vector.extract_strided_slice %267 {offsets = [0, 64], sizes = [4, 32], strides = [1, 1]} : vector<4x128xf32> to vector<4x32xf32>
    %271 = vector.extract_strided_slice %267 {offsets = [0, 96], sizes = [4, 32], strides = [1, 1]} : vector<4x128xf32> to vector<4x32xf32>
    %272 = arith.mulf %269, %259 : vector<4x32xf32>
    %273 = arith.mulf %268, %270 : vector<4x32xf32>
    %274 = arith.addf %272, %273 : vector<4x32xf32>
    %275 = math.tanh %274 : vector<4x32xf32>
    %276 = arith.mulf %271, %275 : vector<4x32xf32>
    %277 = vector.extract_strided_slice %276 {offsets = [0, 0], sizes = [2, 32], strides = [1, 1]} : vector<4x32xf32> to vector<2x32xf32>
    %278 = vector.extract_strided_slice %276 {offsets = [2, 0], sizes = [2, 32], strides = [1, 1]} : vector<4x32xf32> to vector<2x32xf32>
    %c0_53 = arith.constant 0 : index
    %c0_54 = arith.constant 0 : index
    %279 = vector.load %arg11[%c0_53, %c0_54] : memref<2x512xf32, #tpu.memory_space<vmem>>, vector<2x32xf32>
    tpu.vector_store %arg11[%c0_53, %c0_54], %277 {strides = array<i32>} : memref<2x512xf32, #tpu.memory_space<vmem>>, vector<2x32xf32>,
    %c0_55 = arith.constant 0 : index
    %c480 = arith.constant 480 : index
    %280 = vector.load %arg11[%c0_55, %c480] : memref<2x512xf32, #tpu.memory_space<vmem>>, vector<2x32xf32>
    tpu.vector_store %arg11[%c0_55, %c480], %278 {strides = array<i32>} : memref<2x512xf32, #tpu.memory_space<vmem>>, vector<2x32xf32>,
    %281 = vector.extract_strided_slice %256 {offsets = [2, 0], sizes = [2, 128], strides = [1, 1]} : vector<16x128xf32> to vector<2x128xf32>
    %282 = vector.extract_strided_slice %257 {offsets = [12, 0], sizes = [2, 128], strides = [1, 1]} : vector<16x128xf32> to vector<2x128xf32>
    %283 = tpu.concatenate %281, %282 in 0 : vector<2x128xf32>, vector<2x128xf32> -> vector<4x128xf32>
    %284 = arith.truncf %276 : vector<4x32xf32> to vector<4x32xbf16>
    %cst_56 = arith.constant dense<0.000000e+00> : vector<4x256xf32>
    %285 = tpu.matmul %284, %258, %cst_56 {dimension_numbers = #tpu.dot_dimension_numbers<[1], [0], [0], [1], [0, 0, 1, 1], [], []>} : vector<4x32xbf16>, vector<32x256xbf16>, vector<4x256xf32> -> vector<4x256xf32>
    %286 = vector.extract_strided_slice %285 {offsets = [0, 0], sizes = [4, 128], strides = [1, 1]} : vector<4x256xf32> to vector<4x128xf32>
    %287 = vector.extract_strided_slice %285 {offsets = [0, 128], sizes = [4, 128], strides = [1, 1]} : vector<4x256xf32> to vector<4x128xf32>
    %288 = vector.shape_cast %14 : vector<4x1xi1> to vector<4x1xi1>
    %289 = vector.broadcast %288 : vector<4x1xi1> to vector<4x128xi1>
    %290 = arith.select %289, %286, %287 : vector<4x128xi1>, vector<4x128xf32>
    %291 = arith.addf %283, %290 : vector<4x128xf32>
    %292 = math.tanh %291 : vector<4x128xf32>
    %293 = vector.broadcast %8 : vector<1x128xf32> to vector<4x128xf32>
    %294 = arith.mulf %292, %293 : vector<4x128xf32>
    %295 = vector.broadcast %11 : vector<1x128xf32> to vector<4x128xf32>
    %296 = arith.addf %294, %295 : vector<4x128xf32>
    %297 = vector.extract_strided_slice %296 {offsets = [0, 0], sizes = [4, 32], strides = [1, 1]} : vector<4x128xf32> to vector<4x32xf32>
    %298 = vector.extract_strided_slice %296 {offsets = [0, 32], sizes = [4, 32], strides = [1, 1]} : vector<4x128xf32> to vector<4x32xf32>
    %299 = vector.extract_strided_slice %296 {offsets = [0, 64], sizes = [4, 32], strides = [1, 1]} : vector<4x128xf32> to vector<4x32xf32>
    %300 = vector.extract_strided_slice %296 {offsets = [0, 96], sizes = [4, 32], strides = [1, 1]} : vector<4x128xf32> to vector<4x32xf32>
    %301 = arith.mulf %298, %274 : vector<4x32xf32>
    %302 = arith.mulf %297, %299 : vector<4x32xf32>
    %303 = arith.addf %301, %302 : vector<4x32xf32>
    %304 = math.tanh %303 : vector<4x32xf32>
    %305 = arith.mulf %300, %304 : vector<4x32xf32>
    %306 = vector.extract_strided_slice %305 {offsets = [0, 0], sizes = [2, 32], strides = [1, 1]} : vector<4x32xf32> to vector<2x32xf32>
    %307 = vector.extract_strided_slice %305 {offsets = [2, 0], sizes = [2, 32], strides = [1, 1]} : vector<4x32xf32> to vector<2x32xf32>
    %c0_57 = arith.constant 0 : index
    %c64 = arith.constant 64 : index
    %308 = vector.load %arg11[%c0_57, %c64] : memref<2x512xf32, #tpu.memory_space<vmem>>, vector<2x32xf32>
    tpu.vector_store %arg11[%c0_57, %c64], %306 {strides = array<i32>} : memref<2x512xf32, #tpu.memory_space<vmem>>, vector<2x32xf32>,
    %c0_58 = arith.constant 0 : index
    %c416 = arith.constant 416 : index
    %309 = vector.load %arg11[%c0_58, %c416] : memref<2x512xf32, #tpu.memory_space<vmem>>, vector<2x32xf32>
    tpu.vector_store %arg11[%c0_58, %c416], %307 {strides = array<i32>} : memref<2x512xf32, #tpu.memory_space<vmem>>, vector<2x32xf32>,
    %310 = vector.extract_strided_slice %256 {offsets = [4, 0], sizes = [2, 128], strides = [1, 1]} : vector<16x128xf32> to vector<2x128xf32>
    %311 = vector.extract_strided_slice %257 {offsets = [10, 0], sizes = [2, 128], strides = [1, 1]} : vector<16x128xf32> to vector<2x128xf32>
    %312 = tpu.concatenate %310, %311 in 0 : vector<2x128xf32>, vector<2x128xf32> -> vector<4x128xf32>
    %313 = arith.truncf %305 : vector<4x32xf32> to vector<4x32xbf16>
    %cst_59 = arith.constant dense<0.000000e+00> : vector<4x256xf32>
    %314 = tpu.matmul %313, %258, %cst_59 {dimension_numbers = #tpu.dot_dimension_numbers<[1], [0], [0], [1], [0, 0, 1, 1], [], []>} : vector<4x32xbf16>, vector<32x256xbf16>, vector<4x256xf32> -> vector<4x256xf32>
    %315 = vector.extract_strided_slice %314 {offsets = [0, 0], sizes = [4, 128], strides = [1, 1]} : vector<4x256xf32> to vector<4x128xf32>
    %316 = vector.extract_strided_slice %314 {offsets = [0, 128], sizes = [4, 128], strides = [1, 1]} : vector<4x256xf32> to vector<4x128xf32>
    %317 = vector.shape_cast %14 : vector<4x1xi1> to vector<4x1xi1>
    %318 = vector.broadcast %317 : vector<4x1xi1> to vector<4x128xi1>
    %319 = arith.select %318, %315, %316 : vector<4x128xi1>, vector<4x128xf32>
    %320 = arith.addf %312, %319 : vector<4x128xf32>
    %321 = math.tanh %320 : vector<4x128xf32>
    %322 = vector.broadcast %8 : vector<1x128xf32> to vector<4x128xf32>
    %323 = arith.mulf %321, %322 : vector<4x128xf32>
    %324 = vector.broadcast %11 : vector<1x128xf32> to vector<4x128xf32>
    %325 = arith.addf %323, %324 : vector<4x128xf32>
    %326 = vector.extract_strided_slice %325 {offsets = [0, 0], sizes = [4, 32], strides = [1, 1]} : vector<4x128xf32> to vector<4x32xf32>
    %327 = vector.extract_strided_slice %325 {offsets = [0, 32], sizes = [4, 32], strides = [1, 1]} : vector<4x128xf32> to vector<4x32xf32>
    %328 = vector.extract_strided_slice %325 {offsets = [0, 64], sizes = [4, 32], strides = [1, 1]} : vector<4x128xf32> to vector<4x32xf32>
    %329 = vector.extract_strided_slice %325 {offsets = [0, 96], sizes = [4, 32], strides = [1, 1]} : vector<4x128xf32> to vector<4x32xf32>
    %330 = arith.mulf %327, %303 : vector<4x32xf32>
    %331 = arith.mulf %326, %328 : vector<4x32xf32>
    %332 = arith.addf %330, %331 : vector<4x32xf32>
    %333 = math.tanh %332 : vector<4x32xf32>
    %334 = arith.mulf %329, %333 : vector<4x32xf32>
    %335 = vector.extract_strided_slice %334 {offsets = [0, 0], sizes = [2, 32], strides = [1, 1]} : vector<4x32xf32> to vector<2x32xf32>
    %336 = vector.extract_strided_slice %334 {offsets = [2, 0], sizes = [2, 32], strides = [1, 1]} : vector<4x32xf32> to vector<2x32xf32>
    %c0_60 = arith.constant 0 : index
    %c128 = arith.constant 128 : index
    %337 = vector.load %arg11[%c0_60, %c128] : memref<2x512xf32, #tpu.memory_space<vmem>>, vector<2x32xf32>
    tpu.vector_store %arg11[%c0_60, %c128], %335 {strides = array<i32>} : memref<2x512xf32, #tpu.memory_space<vmem>>, vector<2x32xf32>,
    %c0_61 = arith.constant 0 : index
    %c352 = arith.constant 352 : index
    %338 = vector.load %arg11[%c0_61, %c352] : memref<2x512xf32, #tpu.memory_space<vmem>>, vector<2x32xf32>
    tpu.vector_store %arg11[%c0_61, %c352], %336 {strides = array<i32>} : memref<2x512xf32, #tpu.memory_space<vmem>>, vector<2x32xf32>,
    %339 = vector.extract_strided_slice %256 {offsets = [6, 0], sizes = [2, 128], strides = [1, 1]} : vector<16x128xf32> to vector<2x128xf32>
    %340 = vector.extract_strided_slice %257 {offsets = [8, 0], sizes = [2, 128], strides = [1, 1]} : vector<16x128xf32> to vector<2x128xf32>
    %341 = tpu.concatenate %339, %340 in 0 : vector<2x128xf32>, vector<2x128xf32> -> vector<4x128xf32>
    %342 = arith.truncf %334 : vector<4x32xf32> to vector<4x32xbf16>
    %cst_62 = arith.constant dense<0.000000e+00> : vector<4x256xf32>
    %343 = tpu.matmul %342, %258, %cst_62 {dimension_numbers = #tpu.dot_dimension_numbers<[1], [0], [0], [1], [0, 0, 1, 1], [], []>} : vector<4x32xbf16>, vector<32x256xbf16>, vector<4x256xf32> -> vector<4x256xf32>
    %344 = vector.extract_strided_slice %343 {offsets = [0, 0], sizes = [4, 128], strides = [1, 1]} : vector<4x256xf32> to vector<4x128xf32>
    %345 = vector.extract_strided_slice %343 {offsets = [0, 128], sizes = [4, 128], strides = [1, 1]} : vector<4x256xf32> to vector<4x128xf32>
    %346 = vector.shape_cast %14 : vector<4x1xi1> to vector<4x1xi1>
    %347 = vector.broadcast %346 : vector<4x1xi1> to vector<4x128xi1>
    %348 = arith.select %347, %344, %345 : vector<4x128xi1>, vector<4x128xf32>
    %349 = arith.addf %341, %348 : vector<4x128xf32>
    %350 = math.tanh %349 : vector<4x128xf32>
    %351 = vector.broadcast %8 : vector<1x128xf32> to vector<4x128xf32>
    %352 = arith.mulf %350, %351 : vector<4x128xf32>
    %353 = vector.broadcast %11 : vector<1x128xf32> to vector<4x128xf32>
    %354 = arith.addf %352, %353 : vector<4x128xf32>
    %355 = vector.extract_strided_slice %354 {offsets = [0, 0], sizes = [4, 32], strides = [1, 1]} : vector<4x128xf32> to vector<4x32xf32>
    %356 = vector.extract_strided_slice %354 {offsets = [0, 32], sizes = [4, 32], strides = [1, 1]} : vector<4x128xf32> to vector<4x32xf32>
    %357 = vector.extract_strided_slice %354 {offsets = [0, 64], sizes = [4, 32], strides = [1, 1]} : vector<4x128xf32> to vector<4x32xf32>
    %358 = vector.extract_strided_slice %354 {offsets = [0, 96], sizes = [4, 32], strides = [1, 1]} : vector<4x128xf32> to vector<4x32xf32>
    %359 = arith.mulf %356, %332 : vector<4x32xf32>
    %360 = arith.mulf %355, %357 : vector<4x32xf32>
    %361 = arith.addf %359, %360 : vector<4x32xf32>
    %362 = math.tanh %361 : vector<4x32xf32>
    %363 = arith.mulf %358, %362 : vector<4x32xf32>
    %364 = vector.extract_strided_slice %363 {offsets = [0, 0], sizes = [2, 32], strides = [1, 1]} : vector<4x32xf32> to vector<2x32xf32>
    %365 = vector.extract_strided_slice %363 {offsets = [2, 0], sizes = [2, 32], strides = [1, 1]} : vector<4x32xf32> to vector<2x32xf32>
    %c0_63 = arith.constant 0 : index
    %c192 = arith.constant 192 : index
    %366 = vector.load %arg11[%c0_63, %c192] : memref<2x512xf32, #tpu.memory_space<vmem>>, vector<2x32xf32>
    tpu.vector_store %arg11[%c0_63, %c192], %364 {strides = array<i32>} : memref<2x512xf32, #tpu.memory_space<vmem>>, vector<2x32xf32>,
    %c0_64 = arith.constant 0 : index
    %c288 = arith.constant 288 : index
    %367 = vector.load %arg11[%c0_64, %c288] : memref<2x512xf32, #tpu.memory_space<vmem>>, vector<2x32xf32>
    tpu.vector_store %arg11[%c0_64, %c288], %365 {strides = array<i32>} : memref<2x512xf32, #tpu.memory_space<vmem>>, vector<2x32xf32>,
    %368 = vector.extract_strided_slice %256 {offsets = [8, 0], sizes = [2, 128], strides = [1, 1]} : vector<16x128xf32> to vector<2x128xf32>
    %369 = vector.extract_strided_slice %257 {offsets = [6, 0], sizes = [2, 128], strides = [1, 1]} : vector<16x128xf32> to vector<2x128xf32>
    %370 = tpu.concatenate %368, %369 in 0 : vector<2x128xf32>, vector<2x128xf32> -> vector<4x128xf32>
    %371 = arith.truncf %363 : vector<4x32xf32> to vector<4x32xbf16>
    %cst_65 = arith.constant dense<0.000000e+00> : vector<4x256xf32>
    %372 = tpu.matmul %371, %258, %cst_65 {dimension_numbers = #tpu.dot_dimension_numbers<[1], [0], [0], [1], [0, 0, 1, 1], [], []>} : vector<4x32xbf16>, vector<32x256xbf16>, vector<4x256xf32> -> vector<4x256xf32>
    %373 = vector.extract_strided_slice %372 {offsets = [0, 0], sizes = [4, 128], strides = [1, 1]} : vector<4x256xf32> to vector<4x128xf32>
    %374 = vector.extract_strided_slice %372 {offsets = [0, 128], sizes = [4, 128], strides = [1, 1]} : vector<4x256xf32> to vector<4x128xf32>
    %375 = vector.shape_cast %14 : vector<4x1xi1> to vector<4x1xi1>
    %376 = vector.broadcast %375 : vector<4x1xi1> to vector<4x128xi1>
    %377 = arith.select %376, %373, %374 : vector<4x128xi1>, vector<4x128xf32>
    %378 = arith.addf %370, %377 : vector<4x128xf32>
    %379 = math.tanh %378 : vector<4x128xf32>
    %380 = vector.broadcast %8 : vector<1x128xf32> to vector<4x128xf32>
    %381 = arith.mulf %379, %380 : vector<4x128xf32>
    %382 = vector.broadcast %11 : vector<1x128xf32> to vector<4x128xf32>
    %383 = arith.addf %381, %382 : vector<4x128xf32>
    %384 = vector.extract_strided_slice %383 {offsets = [0, 0], sizes = [4, 32], strides = [1, 1]} : vector<4x128xf32> to vector<4x32xf32>
    %385 = vector.extract_strided_slice %383 {offsets = [0, 32], sizes = [4, 32], strides = [1, 1]} : vector<4x128xf32> to vector<4x32xf32>
    %386 = vector.extract_strided_slice %383 {offsets = [0, 64], sizes = [4, 32], strides = [1, 1]} : vector<4x128xf32> to vector<4x32xf32>
    %387 = vector.extract_strided_slice %383 {offsets = [0, 96], sizes = [4, 32], strides = [1, 1]} : vector<4x128xf32> to vector<4x32xf32>
    %388 = arith.mulf %385, %361 : vector<4x32xf32>
    %389 = arith.mulf %384, %386 : vector<4x32xf32>
    %390 = arith.addf %388, %389 : vector<4x32xf32>
    %391 = math.tanh %390 : vector<4x32xf32>
    %392 = arith.mulf %387, %391 : vector<4x32xf32>
    %393 = vector.extract_strided_slice %392 {offsets = [0, 0], sizes = [2, 32], strides = [1, 1]} : vector<4x32xf32> to vector<2x32xf32>
    %394 = vector.extract_strided_slice %392 {offsets = [2, 0], sizes = [2, 32], strides = [1, 1]} : vector<4x32xf32> to vector<2x32xf32>
    %c0_66 = arith.constant 0 : index
    %c256 = arith.constant 256 : index
    %395 = vector.load %arg11[%c0_66, %c256] : memref<2x512xf32, #tpu.memory_space<vmem>>, vector<2x32xf32>
    tpu.vector_store %arg11[%c0_66, %c256], %393 {strides = array<i32>} : memref<2x512xf32, #tpu.memory_space<vmem>>, vector<2x32xf32>,
    %c0_67 = arith.constant 0 : index
    %c224 = arith.constant 224 : index
    %396 = vector.load %arg11[%c0_67, %c224] : memref<2x512xf32, #tpu.memory_space<vmem>>, vector<2x32xf32>
    tpu.vector_store %arg11[%c0_67, %c224], %394 {strides = array<i32>} : memref<2x512xf32, #tpu.memory_space<vmem>>, vector<2x32xf32>,
    %397 = vector.extract_strided_slice %256 {offsets = [10, 0], sizes = [2, 128], strides = [1, 1]} : vector<16x128xf32> to vector<2x128xf32>
    %398 = vector.extract_strided_slice %257 {offsets = [4, 0], sizes = [2, 128], strides = [1, 1]} : vector<16x128xf32> to vector<2x128xf32>
    %399 = tpu.concatenate %397, %398 in 0 : vector<2x128xf32>, vector<2x128xf32> -> vector<4x128xf32>
    %400 = arith.truncf %392 : vector<4x32xf32> to vector<4x32xbf16>
    %cst_68 = arith.constant dense<0.000000e+00> : vector<4x256xf32>
    %401 = tpu.matmul %400, %258, %cst_68 {dimension_numbers = #tpu.dot_dimension_numbers<[1], [0], [0], [1], [0, 0, 1, 1], [], []>} : vector<4x32xbf16>, vector<32x256xbf16>, vector<4x256xf32> -> vector<4x256xf32>
    %402 = vector.extract_strided_slice %401 {offsets = [0, 0], sizes = [4, 128], strides = [1, 1]} : vector<4x256xf32> to vector<4x128xf32>
    %403 = vector.extract_strided_slice %401 {offsets = [0, 128], sizes = [4, 128], strides = [1, 1]} : vector<4x256xf32> to vector<4x128xf32>
    %404 = vector.shape_cast %14 : vector<4x1xi1> to vector<4x1xi1>
    %405 = vector.broadcast %404 : vector<4x1xi1> to vector<4x128xi1>
    %406 = arith.select %405, %402, %403 : vector<4x128xi1>, vector<4x128xf32>
    %407 = arith.addf %399, %406 : vector<4x128xf32>
    %408 = math.tanh %407 : vector<4x128xf32>
    %409 = vector.broadcast %8 : vector<1x128xf32> to vector<4x128xf32>
    %410 = arith.mulf %408, %409 : vector<4x128xf32>
    %411 = vector.broadcast %11 : vector<1x128xf32> to vector<4x128xf32>
    %412 = arith.addf %410, %411 : vector<4x128xf32>
    %413 = vector.extract_strided_slice %412 {offsets = [0, 0], sizes = [4, 32], strides = [1, 1]} : vector<4x128xf32> to vector<4x32xf32>
    %414 = vector.extract_strided_slice %412 {offsets = [0, 32], sizes = [4, 32], strides = [1, 1]} : vector<4x128xf32> to vector<4x32xf32>
    %415 = vector.extract_strided_slice %412 {offsets = [0, 64], sizes = [4, 32], strides = [1, 1]} : vector<4x128xf32> to vector<4x32xf32>
    %416 = vector.extract_strided_slice %412 {offsets = [0, 96], sizes = [4, 32], strides = [1, 1]} : vector<4x128xf32> to vector<4x32xf32>
    %417 = arith.mulf %414, %390 : vector<4x32xf32>
    %418 = arith.mulf %413, %415 : vector<4x32xf32>
    %419 = arith.addf %417, %418 : vector<4x32xf32>
    %420 = math.tanh %419 : vector<4x32xf32>
    %421 = arith.mulf %416, %420 : vector<4x32xf32>
    %422 = vector.extract_strided_slice %421 {offsets = [0, 0], sizes = [2, 32], strides = [1, 1]} : vector<4x32xf32> to vector<2x32xf32>
    %423 = vector.extract_strided_slice %421 {offsets = [2, 0], sizes = [2, 32], strides = [1, 1]} : vector<4x32xf32> to vector<2x32xf32>
    %c0_69 = arith.constant 0 : index
    %c320 = arith.constant 320 : index
    %424 = vector.load %arg11[%c0_69, %c320] : memref<2x512xf32, #tpu.memory_space<vmem>>, vector<2x32xf32>
    tpu.vector_store %arg11[%c0_69, %c320], %422 {strides = array<i32>} : memref<2x512xf32, #tpu.memory_space<vmem>>, vector<2x32xf32>,
    %c0_70 = arith.constant 0 : index
    %c160 = arith.constant 160 : index
    %425 = vector.load %arg11[%c0_70, %c160] : memref<2x512xf32, #tpu.memory_space<vmem>>, vector<2x32xf32>
    tpu.vector_store %arg11[%c0_70, %c160], %423 {strides = array<i32>} : memref<2x512xf32, #tpu.memory_space<vmem>>, vector<2x32xf32>,
    %426 = vector.extract_strided_slice %256 {offsets = [12, 0], sizes = [2, 128], strides = [1, 1]} : vector<16x128xf32> to vector<2x128xf32>
    %427 = vector.extract_strided_slice %257 {offsets = [2, 0], sizes = [2, 128], strides = [1, 1]} : vector<16x128xf32> to vector<2x128xf32>
    %428 = tpu.concatenate %426, %427 in 0 : vector<2x128xf32>, vector<2x128xf32> -> vector<4x128xf32>
    %429 = arith.truncf %421 : vector<4x32xf32> to vector<4x32xbf16>
    %cst_71 = arith.constant dense<0.000000e+00> : vector<4x256xf32>
    %430 = tpu.matmul %429, %258, %cst_71 {dimension_numbers = #tpu.dot_dimension_numbers<[1], [0], [0], [1], [0, 0, 1, 1], [], []>} : vector<4x32xbf16>, vector<32x256xbf16>, vector<4x256xf32> -> vector<4x256xf32>
    %431 = vector.extract_strided_slice %430 {offsets = [0, 0], sizes = [4, 128], strides = [1, 1]} : vector<4x256xf32> to vector<4x128xf32>
    %432 = vector.extract_strided_slice %430 {offsets = [0, 128], sizes = [4, 128], strides = [1, 1]} : vector<4x256xf32> to vector<4x128xf32>
    %433 = vector.shape_cast %14 : vector<4x1xi1> to vector<4x1xi1>
    %434 = vector.broadcast %433 : vector<4x1xi1> to vector<4x128xi1>
    %435 = arith.select %434, %431, %432 : vector<4x128xi1>, vector<4x128xf32>
    %436 = arith.addf %428, %435 : vector<4x128xf32>
    %437 = math.tanh %436 : vector<4x128xf32>
    %438 = vector.broadcast %8 : vector<1x128xf32> to vector<4x128xf32>
    %439 = arith.mulf %437, %438 : vector<4x128xf32>
    %440 = vector.broadcast %11 : vector<1x128xf32> to vector<4x128xf32>
    %441 = arith.addf %439, %440 : vector<4x128xf32>
    %442 = vector.extract_strided_slice %441 {offsets = [0, 0], sizes = [4, 32], strides = [1, 1]} : vector<4x128xf32> to vector<4x32xf32>
    %443 = vector.extract_strided_slice %441 {offsets = [0, 32], sizes = [4, 32], strides = [1, 1]} : vector<4x128xf32> to vector<4x32xf32>
    %444 = vector.extract_strided_slice %441 {offsets = [0, 64], sizes = [4, 32], strides = [1, 1]} : vector<4x128xf32> to vector<4x32xf32>
    %445 = vector.extract_strided_slice %441 {offsets = [0, 96], sizes = [4, 32], strides = [1, 1]} : vector<4x128xf32> to vector<4x32xf32>
    %446 = arith.mulf %443, %419 : vector<4x32xf32>
    %447 = arith.mulf %442, %444 : vector<4x32xf32>
    %448 = arith.addf %446, %447 : vector<4x32xf32>
    %449 = math.tanh %448 : vector<4x32xf32>
    %450 = arith.mulf %445, %449 : vector<4x32xf32>
    %451 = vector.extract_strided_slice %450 {offsets = [0, 0], sizes = [2, 32], strides = [1, 1]} : vector<4x32xf32> to vector<2x32xf32>
    %452 = vector.extract_strided_slice %450 {offsets = [2, 0], sizes = [2, 32], strides = [1, 1]} : vector<4x32xf32> to vector<2x32xf32>
    %c0_72 = arith.constant 0 : index
    %c384 = arith.constant 384 : index
    %453 = vector.load %arg11[%c0_72, %c384] : memref<2x512xf32, #tpu.memory_space<vmem>>, vector<2x32xf32>
    tpu.vector_store %arg11[%c0_72, %c384], %451 {strides = array<i32>} : memref<2x512xf32, #tpu.memory_space<vmem>>, vector<2x32xf32>,
    %c0_73 = arith.constant 0 : index
    %c96 = arith.constant 96 : index
    %454 = vector.load %arg11[%c0_73, %c96] : memref<2x512xf32, #tpu.memory_space<vmem>>, vector<2x32xf32>
    tpu.vector_store %arg11[%c0_73, %c96], %452 {strides = array<i32>} : memref<2x512xf32, #tpu.memory_space<vmem>>, vector<2x32xf32>,
    %455 = vector.extract_strided_slice %256 {offsets = [14, 0], sizes = [2, 128], strides = [1, 1]} : vector<16x128xf32> to vector<2x128xf32>
    %456 = vector.extract_strided_slice %257 {offsets = [0, 0], sizes = [2, 128], strides = [1, 1]} : vector<16x128xf32> to vector<2x128xf32>
    %457 = tpu.concatenate %455, %456 in 0 : vector<2x128xf32>, vector<2x128xf32> -> vector<4x128xf32>
    %458 = arith.truncf %450 : vector<4x32xf32> to vector<4x32xbf16>
    %cst_74 = arith.constant dense<0.000000e+00> : vector<4x256xf32>
    %459 = tpu.matmul %458, %258, %cst_74 {dimension_numbers = #tpu.dot_dimension_numbers<[1], [0], [0], [1], [0, 0, 1, 1], [], []>} : vector<4x32xbf16>, vector<32x256xbf16>, vector<4x256xf32> -> vector<4x256xf32>
    %460 = vector.extract_strided_slice %459 {offsets = [0, 0], sizes = [4, 128], strides = [1, 1]} : vector<4x256xf32> to vector<4x128xf32>
    %461 = vector.extract_strided_slice %459 {offsets = [0, 128], sizes = [4, 128], strides = [1, 1]} : vector<4x256xf32> to vector<4x128xf32>
    %462 = vector.shape_cast %14 : vector<4x1xi1> to vector<4x1xi1>
    %463 = vector.broadcast %462 : vector<4x1xi1> to vector<4x128xi1>
    %464 = arith.select %463, %460, %461 : vector<4x128xi1>, vector<4x128xf32>
    %465 = arith.addf %457, %464 : vector<4x128xf32>
    %466 = math.tanh %465 : vector<4x128xf32>
    %467 = vector.broadcast %8 : vector<1x128xf32> to vector<4x128xf32>
    %468 = arith.mulf %466, %467 : vector<4x128xf32>
    %469 = vector.broadcast %11 : vector<1x128xf32> to vector<4x128xf32>
    %470 = arith.addf %468, %469 : vector<4x128xf32>
    %471 = vector.extract_strided_slice %470 {offsets = [0, 0], sizes = [4, 32], strides = [1, 1]} : vector<4x128xf32> to vector<4x32xf32>
    %472 = vector.extract_strided_slice %470 {offsets = [0, 32], sizes = [4, 32], strides = [1, 1]} : vector<4x128xf32> to vector<4x32xf32>
    %473 = vector.extract_strided_slice %470 {offsets = [0, 64], sizes = [4, 32], strides = [1, 1]} : vector<4x128xf32> to vector<4x32xf32>
    %474 = vector.extract_strided_slice %470 {offsets = [0, 96], sizes = [4, 32], strides = [1, 1]} : vector<4x128xf32> to vector<4x32xf32>
    %475 = arith.mulf %472, %448 : vector<4x32xf32>
    %476 = arith.mulf %471, %473 : vector<4x32xf32>
    %477 = arith.addf %475, %476 : vector<4x32xf32>
    %478 = math.tanh %477 : vector<4x32xf32>
    %479 = arith.mulf %474, %478 : vector<4x32xf32>
    %480 = vector.extract_strided_slice %479 {offsets = [0, 0], sizes = [2, 32], strides = [1, 1]} : vector<4x32xf32> to vector<2x32xf32>
    %481 = vector.extract_strided_slice %479 {offsets = [2, 0], sizes = [2, 32], strides = [1, 1]} : vector<4x32xf32> to vector<2x32xf32>
    %c0_75 = arith.constant 0 : index
    %c448 = arith.constant 448 : index
    %482 = vector.load %arg11[%c0_75, %c448] : memref<2x512xf32, #tpu.memory_space<vmem>>, vector<2x32xf32>
    tpu.vector_store %arg11[%c0_75, %c448], %480 {strides = array<i32>} : memref<2x512xf32, #tpu.memory_space<vmem>>, vector<2x32xf32>,
    %c0_76 = arith.constant 0 : index
    %c32_77 = arith.constant 32 : index
    %483 = vector.load %arg11[%c0_76, %c32_77] : memref<2x512xf32, #tpu.memory_space<vmem>>, vector<2x32xf32>
    tpu.vector_store %arg11[%c0_76, %c32_77], %481 {strides = array<i32>} : memref<2x512xf32, #tpu.memory_space<vmem>>, vector<2x32xf32>,
    %c0_78 = arith.constant 0 : index
    %c0_79 = arith.constant 0 : index
    %484 = vector.load %arg11[%c0_78, %c0_79] : memref<2x512xf32, #tpu.memory_space<vmem>>, vector<2x512xf32>
    %485 = arith.truncf %484 : vector<2x512xf32> to vector<2x512xbf16>
    %c0_80 = arith.constant 0 : index
    %c0_81 = arith.constant 0 : index
    %486 = vector.load %arg7[%c0_80, %c0_81] : memref<512x128xbf16, #tpu.memory_space<vmem>>, vector<512x128xbf16>
    %cst_82 = arith.constant dense<0.000000e+00> : vector<2x128xf32>
    %487 = tpu.matmul %485, %486, %cst_82 {dimension_numbers = #tpu.dot_dimension_numbers<[1], [0], [0], [1], [0, 0, 1, 1], [], []>} : vector<2x512xbf16>, vector<512x128xbf16>, vector<2x128xf32> -> vector<2x128xf32>
    %c0_83 = arith.constant 0 : index
    %c0_84 = arith.constant 0 : index
    %488 = vector.load %arg8[%c0_83, %c0_84] : memref<1x128xf32, #tpu.memory_space<vmem>>, vector<1x128xf32>
    %489 = vector.broadcast %488 : vector<1x128xf32> to vector<2x128xf32>
    %490 = arith.addf %487, %489 : vector<2x128xf32>
    %c0_85 = arith.constant 0 : index
    %c0_86 = arith.constant 0 : index
    %491 = vector.load %arg9[%c0_85, %c0_86] : memref<2x128xf32, #tpu.memory_space<vmem>>, vector<2x128xf32>
    tpu.vector_store %arg9[%c0_85, %c0_86], %490 {strides = array<i32>} : memref<2x128xf32, #tpu.memory_space<vmem>>, vector<2x128xf32>,
    return
  }
}

</mosaic_0001>

<llo_original>
// kernel: tpu_custom_call.1
$region0: #{tpu_custom_call.1}
  #allocation0 [shape = 'u32[]', space=smem, size = 0x4, offset = 0x4, fixed_abs, tag = 'smem constant byte address 0x4 - core index']
  #allocation1 [shape = 'u32[144,128]{1,0:T(1,128)}', space=vmem, size = 0x12000, scoped, tag = 'internal scratch']
  #allocation2 [shape = 'f32[16,64]{1,0:T(8,128)}', space=vmem, size = 0x2000, scoped, tag = 'scratch operand']
  #allocation3 [shape = 'f32[2,512]{1,0:T(2,128)}', space=vmem, size = 0x1000, scoped, tag = 'scratch operand']
  %s0 = inlined_call_operand.hbm [shape: bf16[16,16], index: 0, kind: input, shape index: {}]
  %s1 = inlined_call_operand.hbm [shape: bf16[16,256], index: 1, kind: input, shape index: {}]
  %s2 = inlined_call_operand.hbm [shape: bf16[32,256], index: 2, kind: input, shape index: {}]
  %s3 = inlined_call_operand.vmem [shape: f32[1,256], index: 3, kind: input, shape index: {}]
  %s4 = inlined_call_operand.hbm [shape: bf16[64,256], index: 4, kind: input, shape index: {}]
  %s5 = inlined_call_operand.hbm [shape: bf16[32,256], index: 5, kind: input, shape index: {}]
  %s6 = inlined_call_operand.vmem [shape: f32[1,256], index: 6, kind: input, shape index: {}]
  %s7 = inlined_call_operand.hbm [shape: bf16[512,128], index: 7, kind: input, shape index: {}]
  %s8 = inlined_call_operand.vmem [shape: f32[1,128], index: 8, kind: input, shape index: {}]
  %s9 = inlined_call_operand.hbm [shape: f32[2,128], index: 9, kind: output, shape index: {}]
  %s10 = sld [smem:[#allocation0]]
  $region70: #{tpu_custom_call.1} parent=0
    _
  %s12 = ssub.s32 1, %s10
  %s13 = scalar_select 0, %s12, %s10
  $region1: #{tpu_custom_call.1} parent=0
    #allocation4 [shape = 'u8[4096]{0}', space=vmem, size = 0x1000, scoped, tag = 'input window, operand 0, single buffered']
    #allocation5 [shape = 's32[1]{0}', space=sflag, size = 0x4, scoped, tag = 'scoped memory for tpu_custom_call.1']
    #allocation6 [shape = 's32[1]{0}', space=sflag, size = 0x4, scoped, tag = 'scoped memory for tpu_custom_call.1']
    #allocation7 [shape = 'u8[8192]{0}', space=vmem, size = 0x2000, scoped, tag = 'input window, operand 1, single buffered']
    #allocation8 [shape = 's32[1]{0}', space=sflag, size = 0x4, scoped, tag = 'scoped memory for tpu_custom_call.1']
    #allocation9 [shape = 'u8[16384]{0}', space=vmem, size = 0x4000, scoped, tag = 'input window, operand 2, single buffered']
    #allocation10 [shape = 'u8[32768]{0}', space=vmem, size = 0x8000, scoped, tag = 'input window, operand 4, single buffered']
    #allocation11 [shape = 's32[1]{0}', space=sflag, size = 0x4, scoped, tag = 'scoped memory for tpu_custom_call.1']
    #allocation12 [shape = 'u8[16384]{0}', space=vmem, size = 0x4000, scoped, tag = 'input window, operand 5, single buffered']
    #allocation13 [shape = 'u8[131072]{0}', space=vmem, size = 0x20000, scoped, tag = 'input window, operand 7, single buffered']
    #allocation14 [shape = 's32[1]{0}', space=sflag, size = 0x4, scoped, tag = 'scoped memory for tpu_custom_call.1']
    #allocation15 [shape = 'u8[1024]{0}', space=vmem, size = 0x400, scoped, tag = 'output window, operand 0, single buffered']
    %14 = vsyncpa [#allocation5], 0
    %15 = vsyncpa [#allocation8], 0
    %16 = vsyncpa [#allocation11], 0
    %17 = vsyncpa [#allocation14], 0
    %18 = vsyncpa [#allocation6], 0
    // Predicated region
    $region2: #{tpu_custom_call.1} parent=1 // pred_check
      _
    $region3: #{tpu_custom_call.1} parent=1 // pred_check_branch
      %20 = sbr.rel (0) target = $region5
    $region4: #{tpu_custom_call.1} parent=1 // pred_region
      %s22 = ssub.s32 128, 128
      %23 = vsyncadd [#allocation5], %s22
      %s24 = sshll.u32 [#allocation4], 4
      %s25 = int_to_ptr.vmem [resolvable:$true] %s24
      %30 = dma.hbm_to_vmem [thread:$0]  %s0, 128, %s25, [#allocation5], 64, 64, 4
    $region5: #{tpu_custom_call.1} parent=1 // pred_fallthru
      _
    // Predicated region
    $region6: #{tpu_custom_call.1} parent=1 // pred_check
      _
    $region7: #{tpu_custom_call.1} parent=1 // pred_check_branch
      %32 = sbr.rel (0) target = $region9
    $region8: #{tpu_custom_call.1} parent=1 // pred_region
      %s34 = ssub.s32 256, 256
      %35 = vsyncadd [#allocation8], %s34
      %s36 = sshll.u32 [#allocation7], 4
      %s37 = int_to_ptr.vmem [resolvable:$true] %s36
      %42 = dma.hbm_to_vmem [thread:$0]  %s1, 256, %s37, [#allocation8], 128, 128, 8
    $region9: #{tpu_custom_call.1} parent=1 // pred_fallthru
      _
    // Predicated region
    $region10: #{tpu_custom_call.1} parent=1 // pred_check
      _
    $region11: #{tpu_custom_call.1} parent=1 // pred_check_branch
      %44 = sbr.rel (0) target = $region13
    $region12: #{tpu_custom_call.1} parent=1 // pred_region
      %s46 = ssub.s32 512, 512
      %47 = vsyncadd [#allocation8], %s46
      %s48 = sshll.u32 [#allocation9], 4
      %s49 = int_to_ptr.vmem [resolvable:$true] %s48
      %54 = dma.hbm_to_vmem [thread:$0]  %s2, 512, %s49, [#allocation8], 128, 128, 8
    $region13: #{tpu_custom_call.1} parent=1 // pred_fallthru
      _
    // Predicated region
    $region14: #{tpu_custom_call.1} parent=1 // pred_check
      _
    $region15: #{tpu_custom_call.1} parent=1 // pred_check_branch
      %56 = sbr.rel (0) target = $region17
    $region16: #{tpu_custom_call.1} parent=1 // pred_region
      _
    $region17: #{tpu_custom_call.1} parent=1 // pred_fallthru
      _
    // Predicated region
    $region18: #{tpu_custom_call.1} parent=1 // pred_check
      _
    $region19: #{tpu_custom_call.1} parent=1 // pred_check_branch
      %58 = sbr.rel (0) target = $region21
    $region20: #{tpu_custom_call.1} parent=1 // pred_region
      %s60 = ssub.s32 1024, 1024
      %61 = vsyncadd [#allocation11], %s60
      %s62 = sshll.u32 [#allocation10], 4
      %s63 = int_to_ptr.vmem [resolvable:$true] %s62
      %68 = dma.hbm_to_vmem [thread:$0]  %s4, 1024, %s63, [#allocation11], 128, 128, 8
    $region21: #{tpu_custom_call.1} parent=1 // pred_fallthru
      _
    // Predicated region
    $region22: #{tpu_custom_call.1} parent=1 // pred_check
      _
    $region23: #{tpu_custom_call.1} parent=1 // pred_check_branch
      %70 = sbr.rel (0) target = $region25
    $region24: #{tpu_custom_call.1} parent=1 // pred_region
      %s72 = ssub.s32 512, 512
      %73 = vsyncadd [#allocation11], %s72
      %s74 = sshll.u32 [#allocation12], 4
      %s75 = int_to_ptr.vmem [resolvable:$true] %s74
      %80 = dma.hbm_to_vmem [thread:$0]  %s5, 512, %s75, [#allocation11], 128, 128, 8
    $region25: #{tpu_custom_call.1} parent=1 // pred_fallthru
      _
    // Predicated region
    $region26: #{tpu_custom_call.1} parent=1 // pred_check
      _
    $region27: #{tpu_custom_call.1} parent=1 // pred_check_branch
      %82 = sbr.rel (0) target = $region29
    $region28: #{tpu_custom_call.1} parent=1 // pred_region
      _
    $region29: #{tpu_custom_call.1} parent=1 // pred_fallthru
      _
    // Predicated region
    $region30: #{tpu_custom_call.1} parent=1 // pred_check
      _
    $region31: #{tpu_custom_call.1} parent=1 // pred_check_branch
      %84 = sbr.rel (0) target = $region33
    $region32: #{tpu_custom_call.1} parent=1 // pred_region
      %s86 = ssub.s32 4096, 4096
      %87 = vsyncadd [#allocation14], %s86
      %s88 = sshll.u32 [#allocation13], 4
      %s89 = int_to_ptr.vmem [resolvable:$true] %s88
      %94 = dma.hbm_to_vmem [thread:$0]  %s7, 4096, %s89, [#allocation14], 64, 64, 4
    $region33: #{tpu_custom_call.1} parent=1 // pred_fallthru
      _
    // Predicated region
    $region34: #{tpu_custom_call.1} parent=1 // pred_check
      _
    $region35: #{tpu_custom_call.1} parent=1 // pred_check_branch
      %96 = sbr.rel (0) target = $region37
    $region36: #{tpu_custom_call.1} parent=1 // pred_region
      _
    $region37: #{tpu_custom_call.1} parent=1 // pred_fallthru
      _
    // Predicated region
    $region38: #{tpu_custom_call.1} parent=1 // pred_check
      _
    $region39: #{tpu_custom_call.1} parent=1 // pred_check_branch
      %98 = sbr.rel (0) target = $region41
    $region40: #{tpu_custom_call.1} parent=1 // pred_region
      %99 = dma.done [#allocation5], 128
    $region41: #{tpu_custom_call.1} parent=1 // pred_fallthru
      _
    // Predicated region
    $region42: #{tpu_custom_call.1} parent=1 // pred_check
      _
    $region43: #{tpu_custom_call.1} parent=1 // pred_check_branch
      %101 = sbr.rel (0) target = $region45
    $region44: #{tpu_custom_call.1} parent=1 // pred_region
      %102 = dma.done [#allocation8], 256
    $region45: #{tpu_custom_call.1} parent=1 // pred_fallthru
      _
    // Predicated region
    $region46: #{tpu_custom_call.1} parent=1 // pred_check
      _
    $region47: #{tpu_custom_call.1} parent=1 // pred_check_branch
      %104 = sbr.rel (0) target = $region49
    $region48: #{tpu_custom_call.1} parent=1 // pred_region
      %105 = dma.done [#allocation8], 512
    $region49: #{tpu_custom_call.1} parent=1 // pred_fallthru
      _
    // Predicated region
    $region50: #{tpu_custom_call.1} parent=1 // pred_check
      _
    $region51: #{tpu_custom_call.1} parent=1 // pred_check_branch
      %107 = sbr.rel (0) target = $region53
    $region52: #{tpu_custom_call.1} parent=1 // pred_region
      %108 = dma.done [#allocation11], 1024
    $region53: #{tpu_custom_call.1} parent=1 // pred_fallthru
      _
    // Predicated region
    $region54: #{tpu_custom_call.1} parent=1 // pred_check
      _
    $region55: #{tpu_custom_call.1} parent=1 // pred_check_branch
      %110 = sbr.rel (0) target = $region57
    $region56: #{tpu_custom_call.1} parent=1 // pred_region
      %111 = dma.done [#allocation11], 512
    $region57: #{tpu_custom_call.1} parent=1 // pred_fallthru
      _
    // Predicated region
    $region58: #{tpu_custom_call.1} parent=1 // pred_check
      _
    $region59: #{tpu_custom_call.1} parent=1 // pred_check_branch
      %113 = sbr.rel (0) target = $region61
    $region60: #{tpu_custom_call.1} parent=1 // pred_region
      %114 = dma.done [#allocation14], 4096
    $region61: #{tpu_custom_call.1} parent=1 // pred_fallthru
      _
    %v116 = vlaneseq
    %v117 = vand.u32 %v116, 127
    %vm118 = vcmp.ge.s32.totalorder %v117, 64
    %vm119 = vcmp.lt.s32.totalorder %v117, 96
    %vm120 = vmand %vm118, %vm119
    %v121 = vsel %vm120, 1.0, 0.5
    %v122 = vsel %vm120, 0.0, 0.5
    %v123 = vlaneseq
    %v124 = vshrl.u32 %v123, 7
    %vm125 = vcmp.lt.s32.totalorder %v124, 2
    %v126 = vld [vmem:[#allocation4] sm:$0xf]
    %v127 = vld [vmem:[#allocation4 + $0x4] sm:$0xf]
    %v128 = vld [vmem:[#allocation7] sm:$0xff]
    %v129 = vld [vmem:[#allocation7 + $0x8] sm:$0xff]
    %v130 = vld [vmem:[%s3] sm:$0x3]
    %v132 = vlaneseq
    %v133 = vshrl.u32 %v132, 7
    %v134 = vsub.s32 0, %v133
    %v135 = vrot.slane %v130, %v134
    %v136 = vlaneseq
    %v137 = vshrl.u32 %v136, 7
    %v138 = vsub.s32 1, %v137
    %v139 = vrot.slane %v130, %v138
    %v144 = vunpack.c.l.b16 %v126
    %v145 = vunpack.c.l.b16 %v127
    %v146 = vpack.c.b16 %v145, %v144
    %v149 = vunpack.c.l.b16 %v128
    %v150 = vunpack.c.h.b16 %v128
    %v151 = vunpack.c.l.b16 %v129
    %v152 = vunpack.c.h.b16 %v129
    %v153 = vpack.c.b16 %v151, %v149
    %v154 = vpack.c.b16 %v152, %v150
    %vm157 = vcmask 130048
    %v159 = vsel %vm157, %v146, 0
    %161 = vmatprep.subr.bf16.mxu0 %v154
    %162 = vmatpush1.bf16.msra.mxu0 %v153
    %163 = vmatprep.subr.bf16.mxu0 0
    %164 = vmatpush1.bf16.msra.mxu0 0
    %165 = vmatprep.subr.bf16.mxu0 0
    %166 = vmatpush1.bf16.msra.mxu0 0
    %167 = vmatprep.subr.bf16.mxu0 0
    %168 = vmatpush1.bf16.msra.mxu0 0
    %169 = vmatprep.subr.bf16.mxu0 0
    %170 = vmatpush1.bf16.msra.mxu0 0
    %171 = vmatprep.subr.bf16.mxu0 0
    %172 = vmatpush1.bf16.msra.mxu0 0
    %173 = vmatprep.subr.bf16.mxu0 0
    %174 = vmatpush1.bf16.msra.mxu0 0
    %175 = vmatprep.subr.bf16.mxu0 0
    %176 = vmatpush1.bf16.msra.mxu0 0
    %177 = vmatprep.subr.bf16.mxu0 0
    %178 = vmatpush1.bf16.msra.mxu0 0
    %179 = vmatprep.subr.bf16.mxu0 0
    %180 = vmatpush1.bf16.msra.mxu0 0
    %181 = vmatprep.subr.bf16.mxu0 0
    %182 = vmatpush1.bf16.msra.mxu0 0
    %183 = vmatprep.subr.bf16.mxu0 0
    %184 = vmatpush1.bf16.msra.mxu0 0
    %185 = vmatprep.subr.bf16.mxu0 0
    %186 = vmatpush1.bf16.msra.mxu0 0
    %187 = vmatprep.subr.bf16.mxu0 0
    %188 = vmatpush1.bf16.msra.mxu0 0
    %189 = vmatprep.subr.bf16.mxu0 0
    %190 = vmatpush1.bf16.msra.mxu0 0
    %191 = vmatprep.subr.bf16.mxu0 0
    %192 = vmatpush1.bf16.msra.mxu0 0
    %193 = vmatprep.mubr.bf16.mxu0 0
    %194 = vmatmul.mubr.bf16.gmra.mrb[0].mxu0 %v159
    %v195 = vpop.f32.mrb[0].mxu0
    %v196 = vadd.f32 %v135, %v195
    %v197 = vpop.f32.mrb[0].mxu0
    %v198 = vadd.f32 %v139, %v197
    %v199 = vpop.f32.mrb[0].mxu0
    %v200 = vadd.f32 %v135, %v199
    %v201 = vpop.f32.mrb[0].mxu0
    %v202 = vadd.f32 %v139, %v201
    %203 = vdwg.mxu0
    %v204 = vld [vmem:[#allocation9] sm:$0xff]
    %v205 = vld [vmem:[#allocation9 + $0x8] sm:$0xff]
    %v206 = vld [vmem:[#allocation9 + $0x10] sm:$0xff]
    %v207 = vld [vmem:[#allocation9 + $0x18] sm:$0xff]
    %v209 = vrot.slane %v202, 4
    %vm211 = vcmask 1041408
    %v212 = vsel %vm211, %v196, %v209
    %v213 = vtanh.pop %v212
    %v214 = vmul.f32 %v213, %v121
    %v215 = vadd.f32 %v214, %v122
    %v216 = vmul.f32 %v215, 0.0
    %218 = vrot.lane.b32.xlu0 %v215, 64
    %v219 = vpop.permute.xlu0 %218
    %v221 = vmul.f32 %v215, %v219
    %223 = vrot.lane.b32.xlu0 %v221, 32
    %v224 = vpop.permute.xlu0 %223
    %v226 = vadd.f32 %v216, %v224
    %v227 = vtanh.pop %v226
    %229 = vrot.lane.b32.xlu0 %v227, 64
    %v230 = vpop.permute.xlu0 %229
    %v232 = vmul.f32 %v215, %v230
    %234 = vrot.lane.b32.xlu0 %v232, 32
    %v235 = vpop.permute.xlu0 %234
    %vm237 = vcmask 254976
    %238 = vst.msk [vmem:[#allocation2] sm:$0x3] %vm237, %v235
    %239 = vrot.lane.b32.xlu0 %v232, 64
    %v240 = vpop.permute.xlu0 %239
    %vm242 = vcmask 519426
    %243 = vst.msk [vmem:[#allocation2 + $0xc] sm:$0xc] %vm242, %v240
    %v245 = vrot.slane %v196, 2
    %v247 = vrot.slane %v202, 2
    %v249 = vsel %vm211, %v245, %v247
    %v250 = vpack.c.bf16 %v232, %v232
    %252 = vrot.lane.b32.xlu0 %v250, 32
    %v253 = vpop.permute.xlu0 %252
    %v258 = vunpack.c.l.b16 %v204
    %v259 = vunpack.c.h.b16 %v204
    %v260 = vunpack.c.l.b16 %v205
    %v261 = vunpack.c.h.b16 %v205
    %v262 = vunpack.c.l.b16 %v206
    %v263 = vunpack.c.h.b16 %v206
    %v264 = vunpack.c.l.b16 %v207
    %v265 = vunpack.c.h.b16 %v207
    %v266 = vpack.c.b16 %v260, %v258
    %v267 = vpack.c.b16 %v261, %v259
    %v268 = vpack.c.b16 %v264, %v262
    %v269 = vpack.c.b16 %v265, %v263
    %vm274 = vcmask 261120
    %v276 = vsel %vm274, %v253, 0
    %278 = vmatprep.subr.bf16.mxu0 %v267
    %279 = vmatpush1.bf16.msra.mxu0 %v266
    %280 = vmatprep.subr.bf16.mxu0 %v269
    %281 = vmatpush1.bf16.msra.mxu0 %v268
    %282 = vmatprep.subr.bf16.mxu0 0
    %283 = vmatpush1.bf16.msra.mxu0 0
    %284 = vmatprep.subr.bf16.mxu0 0
    %285 = vmatpush1.bf16.msra.mxu0 0
    %286 = vmatprep.subr.bf16.mxu0 0
    %287 = vmatpush1.bf16.msra.mxu0 0
    %288 = vmatprep.subr.bf16.mxu0 0
    %289 = vmatpush1.bf16.msra.mxu0 0
    %290 = vmatprep.subr.bf16.mxu0 0
    %291 = vmatpush1.bf16.msra.mxu0 0
    %292 = vmatprep.subr.bf16.mxu0 0
    %293 = vmatpush1.bf16.msra.mxu0 0
    %294 = vmatprep.subr.bf16.mxu0 0
    %295 = vmatpush1.bf16.msra.mxu0 0
    %296 = vmatprep.subr.bf16.mxu0 0
    %297 = vmatpush1.bf16.msra.mxu0 0
    %298 = vmatprep.subr.bf16.mxu0 0
    %299 = vmatpush1.bf16.msra.mxu0 0
    %300 = vmatprep.subr.bf16.mxu0 0
    %301 = vmatpush1.bf16.msra.mxu0 0
    %302 = vmatprep.subr.bf16.mxu0 0
    %303 = vmatpush1.bf16.msra.mxu0 0
    %304 = vmatprep.subr.bf16.mxu0 0
    %305 = vmatpush1.bf16.msra.mxu0 0
    %306 = vmatprep.subr.bf16.mxu0 0
    %307 = vmatpush1.bf16.msra.mxu0 0
    %308 = vmatprep.subr.bf16.mxu0 0
    %309 = vmatpush1.bf16.msra.mxu0 0
    %310 = vmatprep.mubr.bf16.mxu0 0
    %311 = vmatmul.mubr.bf16.gmra.mrb[0].mxu0 %v276
    %v312 = vpop.f32.mrb[0].mxu0
    %v313 = vadd.f32 0.0, %v312
    %v314 = vpop.f32.mrb[0].mxu0
    %v315 = vadd.f32 0.0, %v314
    %v316 = vpop.f32.mrb[0].mxu0
    %v317 = vpop.f32.mrb[0].mxu0
    %318 = vdwg.mxu0
    %v319 = vsel %vm125, 1, 0
    %vm320 = vcmp.eq.s32.totalorder %v319, 1
    %v321 = vsel %vm320, %v313, %v315
    %v322 = vadd.f32 %v249, %v321
    %v323 = vtanh.pop %v322
    %v324 = vmul.f32 %v323, %v121
    %v325 = vadd.f32 %v324, %v122
    %v326 = vmul.f32 %v325, %v226
    %328 = vrot.lane.b32.xlu0 %v325, 64
    %v329 = vpop.permute.xlu0 %328
    %v331 = vmul.f32 %v325, %v329
    %333 = vrot.lane.b32.xlu0 %v331, 32
    %v334 = vpop.permute.xlu0 %333
    %v336 = vadd.f32 %v326, %v334
    %v337 = vtanh.pop %v336
    %339 = vrot.lane.b32.xlu0 %v337, 64
    %v340 = vpop.permute.xlu0 %339
    %v342 = vmul.f32 %v325, %v340
    %344 = vrot.lane.b32.xlu0 %v342, 32
    %v345 = vpop.permute.xlu0 %344
    %347 = vst.msk [vmem:[#allocation2 + $0x2] sm:$0x3] %vm237, %v345
    %348 = vrot.lane.b32.xlu0 %v342, 64
    %v349 = vpop.permute.xlu0 %348
    %351 = vst.msk [vmem:[#allocation2 + $0xa] sm:$0xc] %vm242, %v349
    %v352 = vrot.slane %v196, 4
    %v354 = vsel %vm211, %v352, %v202
    %v355 = vpack.c.bf16 %v342, %v342
    %357 = vrot.lane.b32.xlu0 %v355, 32
    %v358 = vpop.permute.xlu0 %357
    %v360 = vsel %vm274, %v358, 0
    %362 = vmatprep.subr.bf16.mxu0 %v267
    %363 = vmatpush1.bf16.msra.mxu0 %v266
    %364 = vmatprep.subr.bf16.mxu0 %v269
    %365 = vmatpush1.bf16.msra.mxu0 %v268
    %366 = vmatprep.subr.bf16.mxu0 0
    %367 = vmatpush1.bf16.msra.mxu0 0
    %368 = vmatprep.subr.bf16.mxu0 0
    %369 = vmatpush1.bf16.msra.mxu0 0
    %370 = vmatprep.subr.bf16.mxu0 0
    %371 = vmatpush1.bf16.msra.mxu0 0
    %372 = vmatprep.subr.bf16.mxu0 0
    %373 = vmatpush1.bf16.msra.mxu0 0
    %374 = vmatprep.subr.bf16.mxu0 0
    %375 = vmatpush1.bf16.msra.mxu0 0
    %376 = vmatprep.subr.bf16.mxu0 0
    %377 = vmatpush1.bf16.msra.mxu0 0
    %378 = vmatprep.subr.bf16.mxu0 0
    %379 = vmatpush1.bf16.msra.mxu0 0
    %380 = vmatprep.subr.bf16.mxu0 0
    %381 = vmatpush1.bf16.msra.mxu0 0
    %382 = vmatprep.subr.bf16.mxu0 0
    %383 = vmatpush1.bf16.msra.mxu0 0
    %384 = vmatprep.subr.bf16.mxu0 0
    %385 = vmatpush1.bf16.msra.mxu0 0
    %386 = vmatprep.subr.bf16.mxu0 0
    %387 = vmatpush1.bf16.msra.mxu0 0
    %388 = vmatprep.subr.bf16.mxu0 0
    %389 = vmatpush1.bf16.msra.mxu0 0
    %390 = vmatprep.subr.bf16.mxu0 0
    %391 = vmatpush1.bf16.msra.mxu0 0
    %392 = vmatprep.subr.bf16.mxu0 0
    %393 = vmatpush1.bf16.msra.mxu0 0
    %394 = vmatprep.mubr.bf16.mxu0 0
    %395 = vmatmul.mubr.bf16.gmra.mrb[0].mxu0 %v360
    %v396 = vpop.f32.mrb[0].mxu0
    %v397 = vadd.f32 0.0, %v396
    %v398 = vpop.f32.mrb[0].mxu0
    %v399 = vadd.f32 0.0, %v398
    %v400 = vpop.f32.mrb[0].mxu0
    %v401 = vpop.f32.mrb[0].mxu0
    %402 = vdwg.mxu0
    %v403 = vsel %vm320, %v397, %v399
    %v404 = vadd.f32 %v354, %v403
    %v405 = vtanh.pop %v404
    %v406 = vmul.f32 %v405, %v121
    %v407 = vadd.f32 %v406, %v122
    %v408 = vmul.f32 %v407, %v336
    %410 = vrot.lane.b32.xlu0 %v407, 64
    %v411 = vpop.permute.xlu0 %410
    %v413 = vmul.f32 %v407, %v411
    %415 = vrot.lane.b32.xlu0 %v413, 32
    %v416 = vpop.permute.xlu0 %415
    %v418 = vadd.f32 %v408, %v416
    %v419 = vtanh.pop %v418
    %421 = vrot.lane.b32.xlu0 %v419, 64
    %v422 = vpop.permute.xlu0 %421
    %v424 = vmul.f32 %v407, %v422
    %426 = vrot.lane.b32.xlu0 %v424, 32
    %v427 = vpop.permute.xlu0 %426
    %429 = vst.msk [vmem:[#allocation2 + $0x4] sm:$0x3] %vm237, %v427
    %430 = vrot.lane.b32.xlu0 %v424, 64
    %v431 = vpop.permute.xlu0 %430
    %433 = vst.msk [vmem:[#allocation2 + $0x8] sm:$0xc] %vm242, %v431
    %v434 = vrot.slane %v196, 6
    %v436 = vrot.slane %v202, 6
    %v438 = vsel %vm211, %v434, %v436
    %v439 = vpack.c.bf16 %v424, %v424
    %441 = vrot.lane.b32.xlu0 %v439, 32
    %v442 = vpop.permute.xlu0 %441
    %v444 = vsel %vm274, %v442, 0
    %446 = vmatprep.subr.bf16.mxu0 %v267
    %447 = vmatpush1.bf16.msra.mxu0 %v266
    %448 = vmatprep.subr.bf16.mxu0 %v269
    %449 = vmatpush1.bf16.msra.mxu0 %v268
    %450 = vmatprep.subr.bf16.mxu0 0
    %451 = vmatpush1.bf16.msra.mxu0 0
    %452 = vmatprep.subr.bf16.mxu0 0
    %453 = vmatpush1.bf16.msra.mxu0 0
    %454 = vmatprep.subr.bf16.mxu0 0
    %455 = vmatpush1.bf16.msra.mxu0 0
    %456 = vmatprep.subr.bf16.mxu0 0
    %457 = vmatpush1.bf16.msra.mxu0 0
    %458 = vmatprep.subr.bf16.mxu0 0
    %459 = vmatpush1.bf16.msra.mxu0 0
    %460 = vmatprep.subr.bf16.mxu0 0
    %461 = vmatpush1.bf16.msra.mxu0 0
    %462 = vmatprep.subr.bf16.mxu0 0
    %463 = vmatpush1.bf16.msra.mxu0 0
    %464 = vmatprep.subr.bf16.mxu0 0
    %465 = vmatpush1.bf16.msra.mxu0 0
    %466 = vmatprep.subr.bf16.mxu0 0
    %467 = vmatpush1.bf16.msra.mxu0 0
    %468 = vmatprep.subr.bf16.mxu0 0
    %469 = vmatpush1.bf16.msra.mxu0 0
    %470 = vmatprep.subr.bf16.mxu0 0
    %471 = vmatpush1.bf16.msra.mxu0 0
    %472 = vmatprep.subr.bf16.mxu0 0
    %473 = vmatpush1.bf16.msra.mxu0 0
    %474 = vmatprep.subr.bf16.mxu0 0
    %475 = vmatpush1.bf16.msra.mxu0 0
    %476 = vmatprep.subr.bf16.mxu0 0
    %477 = vmatpush1.bf16.msra.mxu0 0
    %478 = vmatprep.mubr.bf16.mxu0 0
    %479 = vmatmul.mubr.bf16.gmra.mrb[0].mxu0 %v444
    %v480 = vpop.f32.mrb[0].mxu0
    %v481 = vadd.f32 0.0, %v480
    %v482 = vpop.f32.mrb[0].mxu0
    %v483 = vadd.f32 0.0, %v482
    %v484 = vpop.f32.mrb[0].mxu0
    %v485 = vpop.f32.mrb[0].mxu0
    %486 = vdwg.mxu0
    %v487 = vsel %vm320, %v481, %v483
    %v488 = vadd.f32 %v438, %v487
    %v489 = vtanh.pop %v488
    %v490 = vmul.f32 %v489, %v121
    %v491 = vadd.f32 %v490, %v122
    %v492 = vmul.f32 %v491, %v418
    %494 = vrot.lane.b32.xlu0 %v491, 64
    %v495 = vpop.permute.xlu0 %494
    %v497 = vmul.f32 %v491, %v495
    %499 = vrot.lane.b32.xlu0 %v497, 32
    %v500 = vpop.permute.xlu0 %499
    %v502 = vadd.f32 %v492, %v500
    %v503 = vtanh.pop %v502
    %505 = vrot.lane.b32.xlu0 %v503, 64
    %v506 = vpop.permute.xlu0 %505
    %v508 = vmul.f32 %v491, %v506
    %510 = vrot.lane.b32.xlu0 %v508, 32
    %v511 = vpop.permute.xlu0 %510
    %513 = vst.msk [vmem:[#allocation2 + $0x6] sm:$0x3] %vm237, %v511
    %514 = vrot.lane.b32.xlu0 %v508, 64
    %v515 = vpop.permute.xlu0 %514
    %517 = vst.msk [vmem:[#allocation2 + $0x6] sm:$0xc] %vm242, %v515
    %v519 = vrot.slane %v198, 4
    %v521 = vsel %vm211, %v200, %v519
    %v522 = vpack.c.bf16 %v508, %v508
    %524 = vrot.lane.b32.xlu0 %v522, 32
    %v525 = vpop.permute.xlu0 %524
    %v527 = vsel %vm274, %v525, 0
    %529 = vmatprep.subr.bf16.mxu0 %v267
    %530 = vmatpush1.bf16.msra.mxu0 %v266
    %531 = vmatprep.subr.bf16.mxu0 %v269
    %532 = vmatpush1.bf16.msra.mxu0 %v268
    %533 = vmatprep.subr.bf16.mxu0 0
    %534 = vmatpush1.bf16.msra.mxu0 0
    %535 = vmatprep.subr.bf16.mxu0 0
    %536 = vmatpush1.bf16.msra.mxu0 0
    %537 = vmatprep.subr.bf16.mxu0 0
    %538 = vmatpush1.bf16.msra.mxu0 0
    %539 = vmatprep.subr.bf16.mxu0 0
    %540 = vmatpush1.bf16.msra.mxu0 0
    %541 = vmatprep.subr.bf16.mxu0 0
    %542 = vmatpush1.bf16.msra.mxu0 0
    %543 = vmatprep.subr.bf16.mxu0 0
    %544 = vmatpush1.bf16.msra.mxu0 0
    %545 = vmatprep.subr.bf16.mxu0 0
    %546 = vmatpush1.bf16.msra.mxu0 0
    %547 = vmatprep.subr.bf16.mxu0 0
    %548 = vmatpush1.bf16.msra.mxu0 0
    %549 = vmatprep.subr.bf16.mxu0 0
    %550 = vmatpush1.bf16.msra.mxu0 0
    %551 = vmatprep.subr.bf16.mxu0 0
    %552 = vmatpush1.bf16.msra.mxu0 0
    %553 = vmatprep.subr.bf16.mxu0 0
    %554 = vmatpush1.bf16.msra.mxu0 0
    %555 = vmatprep.subr.bf16.mxu0 0
    %556 = vmatpush1.bf16.msra.mxu0 0
    %557 = vmatprep.subr.bf16.mxu0 0
    %558 = vmatpush1.bf16.msra.mxu0 0
    %559 = vmatprep.subr.bf16.mxu0 0
    %560 = vmatpush1.bf16.msra.mxu0 0
    %561 = vmatprep.mubr.bf16.mxu0 0
    %562 = vmatmul.mubr.bf16.gmra.mrb[0].mxu0 %v527
    %v563 = vpop.f32.mrb[0].mxu0
    %v564 = vadd.f32 0.0, %v563
    %v565 = vpop.f32.mrb[0].mxu0
    %v566 = vadd.f32 0.0, %v565
    %v567 = vpop.f32.mrb[0].mxu0
    %v568 = vpop.f32.mrb[0].mxu0
    %569 = vdwg.mxu0
    %v570 = vsel %vm320, %v564, %v566
    %v571 = vadd.f32 %v521, %v570
    %v572 = vtanh.pop %v571
    %v573 = vmul.f32 %v572, %v121
    %v574 = vadd.f32 %v573, %v122
    %v575 = vmul.f32 %v574, %v502
    %577 = vrot.lane.b32.xlu0 %v574, 64
    %v578 = vpop.permute.xlu0 %577
    %v580 = vmul.f32 %v574, %v578
    %582 = vrot.lane.b32.xlu0 %v580, 32
    %v583 = vpop.permute.xlu0 %582
    %v585 = vadd.f32 %v575, %v583
    %v586 = vtanh.pop %v585
    %588 = vrot.lane.b32.xlu0 %v586, 64
    %v589 = vpop.permute.xlu0 %588
    %v591 = vmul.f32 %v574, %v589
    %593 = vrot.lane.b32.xlu0 %v591, 32
    %v594 = vpop.permute.xlu0 %593
    %596 = vst.msk [vmem:[#allocation2 + $0x8] sm:$0x3] %vm237, %v594
    %597 = vrot.lane.b32.xlu0 %v591, 64
    %v598 = vpop.permute.xlu0 %597
    %600 = vst.msk [vmem:[#allocation2 + $0x4] sm:$0xc] %vm242, %v598
    %v602 = vrot.slane %v200, 2
    %v604 = vrot.slane %v198, 2
    %v606 = vsel %vm211, %v602, %v604
    %v607 = vpack.c.bf16 %v591, %v591
    %609 = vrot.lane.b32.xlu0 %v607, 32
    %v610 = vpop.permute.xlu0 %609
    %v612 = vsel %vm274, %v610, 0
    %614 = vmatprep.subr.bf16.mxu0 %v267
    %615 = vmatpush1.bf16.msra.mxu0 %v266
    %616 = vmatprep.subr.bf16.mxu0 %v269
    %617 = vmatpush1.bf16.msra.mxu0 %v268
    %618 = vmatprep.subr.bf16.mxu0 0
    %619 = vmatpush1.bf16.msra.mxu0 0
    %620 = vmatprep.subr.bf16.mxu0 0
    %621 = vmatpush1.bf16.msra.mxu0 0
    %622 = vmatprep.subr.bf16.mxu0 0
    %623 = vmatpush1.bf16.msra.mxu0 0
    %624 = vmatprep.subr.bf16.mxu0 0
    %625 = vmatpush1.bf16.msra.mxu0 0
    %626 = vmatprep.subr.bf16.mxu0 0
    %627 = vmatpush1.bf16.msra.mxu0 0
    %628 = vmatprep.subr.bf16.mxu0 0
    %629 = vmatpush1.bf16.msra.mxu0 0
    %630 = vmatprep.subr.bf16.mxu0 0
    %631 = vmatpush1.bf16.msra.mxu0 0
    %632 = vmatprep.subr.bf16.mxu0 0
    %633 = vmatpush1.bf16.msra.mxu0 0
    %634 = vmatprep.subr.bf16.mxu0 0
    %635 = vmatpush1.bf16.msra.mxu0 0
    %636 = vmatprep.subr.bf16.mxu0 0
    %637 = vmatpush1.bf16.msra.mxu0 0
    %638 = vmatprep.subr.bf16.mxu0 0
    %639 = vmatpush1.bf16.msra.mxu0 0
    %640 = vmatprep.subr.bf16.mxu0 0
    %641 = vmatpush1.bf16.msra.mxu0 0
    %642 = vmatprep.subr.bf16.mxu0 0
    %643 = vmatpush1.bf16.msra.mxu0 0
    %644 = vmatprep.subr.bf16.mxu0 0
    %645 = vmatpush1.bf16.msra.mxu0 0
    %646 = vmatprep.mubr.bf16.mxu0 0
    %647 = vmatmul.mubr.bf16.gmra.mrb[0].mxu0 %v612
    %v648 = vpop.f32.mrb[0].mxu0
    %v649 = vadd.f32 0.0, %v648
    %v650 = vpop.f32.mrb[0].mxu0
    %v651 = vadd.f32 0.0, %v650
    %v652 = vpop.f32.mrb[0].mxu0
    %v653 = vpop.f32.mrb[0].mxu0
    %654 = vdwg.mxu0
    %v655 = vsel %vm320, %v649, %v651
    %v656 = vadd.f32 %v606, %v655
    %v657 = vtanh.pop %v656
    %v658 = vmul.f32 %v657, %v121
    %v659 = vadd.f32 %v658, %v122
    %v660 = vmul.f32 %v659, %v585
    %662 = vrot.lane.b32.xlu0 %v659, 64
    %v663 = vpop.permute.xlu0 %662
    %v665 = vmul.f32 %v659, %v663
    %667 = vrot.lane.b32.xlu0 %v665, 32
    %v668 = vpop.permute.xlu0 %667
    %v670 = vadd.f32 %v660, %v668
    %v671 = vtanh.pop %v670
    %673 = vrot.lane.b32.xlu0 %v671, 64
    %v674 = vpop.permute.xlu0 %673
    %v676 = vmul.f32 %v659, %v674
    %678 = vrot.lane.b32.xlu0 %v676, 32
    %v679 = vpop.permute.xlu0 %678
    %681 = vst.msk [vmem:[#allocation2 + $0xa] sm:$0x3] %vm237, %v679
    %682 = vrot.lane.b32.xlu0 %v676, 64
    %v683 = vpop.permute.xlu0 %682
    %685 = vst.msk [vmem:[#allocation2 + $0x2] sm:$0xc] %vm242, %v683
    %v686 = vrot.slane %v200, 4
    %v688 = vsel %vm211, %v686, %v198
    %v689 = vpack.c.bf16 %v676, %v676
    %691 = vrot.lane.b32.xlu0 %v689, 32
    %v692 = vpop.permute.xlu0 %691
    %v694 = vsel %vm274, %v692, 0
    %696 = vmatprep.subr.bf16.mxu0 %v267
    %697 = vmatpush1.bf16.msra.mxu0 %v266
    %698 = vmatprep.subr.bf16.mxu0 %v269
    %699 = vmatpush1.bf16.msra.mxu0 %v268
    %700 = vmatprep.subr.bf16.mxu0 0
    %701 = vmatpush1.bf16.msra.mxu0 0
    %702 = vmatprep.subr.bf16.mxu0 0
    %703 = vmatpush1.bf16.msra.mxu0 0
    %704 = vmatprep.subr.bf16.mxu0 0
    %705 = vmatpush1.bf16.msra.mxu0 0
    %706 = vmatprep.subr.bf16.mxu0 0
    %707 = vmatpush1.bf16.msra.mxu0 0
    %708 = vmatprep.subr.bf16.mxu0 0
    %709 = vmatpush1.bf16.msra.mxu0 0
    %710 = vmatprep.subr.bf16.mxu0 0
    %711 = vmatpush1.bf16.msra.mxu0 0
    %712 = vmatprep.subr.bf16.mxu0 0
    %713 = vmatpush1.bf16.msra.mxu0 0
    %714 = vmatprep.subr.bf16.mxu0 0
    %715 = vmatpush1.bf16.msra.mxu0 0
    %716 = vmatprep.subr.bf16.mxu0 0
    %717 = vmatpush1.bf16.msra.mxu0 0
    %718 = vmatprep.subr.bf16.mxu0 0
    %719 = vmatpush1.bf16.msra.mxu0 0
    %720 = vmatprep.subr.bf16.mxu0 0
    %721 = vmatpush1.bf16.msra.mxu0 0
    %722 = vmatprep.subr.bf16.mxu0 0
    %723 = vmatpush1.bf16.msra.mxu0 0
    %724 = vmatprep.subr.bf16.mxu0 0
    %725 = vmatpush1.bf16.msra.mxu0 0
    %726 = vmatprep.subr.bf16.mxu0 0
    %727 = vmatpush1.bf16.msra.mxu0 0
    %728 = vmatprep.mubr.bf16.mxu0 0
    %729 = vmatmul.mubr.bf16.gmra.mrb[0].mxu0 %v694
    %v730 = vpop.f32.mrb[0].mxu0
    %v731 = vadd.f32 0.0, %v730
    %v732 = vpop.f32.mrb[0].mxu0
    %v733 = vadd.f32 0.0, %v732
    %v734 = vpop.f32.mrb[0].mxu0
    %v735 = vpop.f32.mrb[0].mxu0
    %736 = vdwg.mxu0
    %v737 = vsel %vm320, %v731, %v733
    %v738 = vadd.f32 %v688, %v737
    %v739 = vtanh.pop %v738
    %v740 = vmul.f32 %v739, %v121
    %v741 = vadd.f32 %v740, %v122
    %v742 = vmul.f32 %v741, %v670
    %744 = vrot.lane.b32.xlu0 %v741, 64
    %v745 = vpop.permute.xlu0 %744
    %v747 = vmul.f32 %v741, %v745
    %749 = vrot.lane.b32.xlu0 %v747, 32
    %v750 = vpop.permute.xlu0 %749
    %v752 = vadd.f32 %v742, %v750
    %v753 = vtanh.pop %v752
    %755 = vrot.lane.b32.xlu0 %v753, 64
    %v756 = vpop.permute.xlu0 %755
    %v758 = vmul.f32 %v741, %v756
    %760 = vrot.lane.b32.xlu0 %v758, 32
    %v761 = vpop.permute.xlu0 %760
    %763 = vst.msk [vmem:[#allocation2 + $0xc] sm:$0x3] %vm237, %v761
    %764 = vrot.lane.b32.xlu0 %v758, 64
    %v765 = vpop.permute.xlu0 %764
    %767 = vst.msk [vmem:[#allocation2] sm:$0xc] %vm242, %v765
    %v768 = vrot.slane %v200, 6
    %v770 = vrot.slane %v198, 6
    %v772 = vsel %vm211, %v768, %v770
    %v773 = vpack.c.bf16 %v758, %v758
    %775 = vrot.lane.b32.xlu0 %v773, 32
    %v776 = vpop.permute.xlu0 %775
    %v778 = vsel %vm274, %v776, 0
    %780 = vmatprep.subr.bf16.mxu0 %v267
    %781 = vmatpush1.bf16.msra.mxu0 %v266
    %782 = vmatprep.subr.bf16.mxu0 %v269
    %783 = vmatpush1.bf16.msra.mxu0 %v268
    %784 = vmatprep.subr.bf16.mxu0 0
    %785 = vmatpush1.bf16.msra.mxu0 0
    %786 = vmatprep.subr.bf16.mxu0 0
    %787 = vmatpush1.bf16.msra.mxu0 0
    %788 = vmatprep.subr.bf16.mxu0 0
    %789 = vmatpush1.bf16.msra.mxu0 0
    %790 = vmatprep.subr.bf16.mxu0 0
    %791 = vmatpush1.bf16.msra.mxu0 0
    %792 = vmatprep.subr.bf16.mxu0 0
    %793 = vmatpush1.bf16.msra.mxu0 0
    %794 = vmatprep.subr.bf16.mxu0 0
    %795 = vmatpush1.bf16.msra.mxu0 0
    %796 = vmatprep.subr.bf16.mxu0 0
    %797 = vmatpush1.bf16.msra.mxu0 0
    %798 = vmatprep.subr.bf16.mxu0 0
    %799 = vmatpush1.bf16.msra.mxu0 0
    %800 = vmatprep.subr.bf16.mxu0 0
    %801 = vmatpush1.bf16.msra.mxu0 0
    %802 = vmatprep.subr.bf16.mxu0 0
    %803 = vmatpush1.bf16.msra.mxu0 0
    %804 = vmatprep.subr.bf16.mxu0 0
    %805 = vmatpush1.bf16.msra.mxu0 0
    %806 = vmatprep.subr.bf16.mxu0 0
    %807 = vmatpush1.bf16.msra.mxu0 0
    %808 = vmatprep.subr.bf16.mxu0 0
    %809 = vmatpush1.bf16.msra.mxu0 0
    %810 = vmatprep.subr.bf16.mxu0 0
    %811 = vmatpush1.bf16.msra.mxu0 0
    %812 = vmatprep.mubr.bf16.mxu0 0
    %813 = vmatmul.mubr.bf16.gmra.mrb[0].mxu0 %v778
    %v814 = vpop.f32.mrb[0].mxu0
    %v815 = vadd.f32 0.0, %v814
    %v816 = vpop.f32.mrb[0].mxu0
    %v817 = vadd.f32 0.0, %v816
    %v818 = vpop.f32.mrb[0].mxu0
    %v819 = vpop.f32.mrb[0].mxu0
    %820 = vdwg.mxu0
    %v821 = vsel %vm320, %v815, %v817
    %v822 = vadd.f32 %v772, %v821
    %v823 = vtanh.pop %v822
    %v824 = vmul.f32 %v823, %v121
    %v825 = vadd.f32 %v824, %v122
    %v826 = vmul.f32 %v825, %v752
    %828 = vrot.lane.b32.xlu0 %v825, 64
    %v829 = vpop.permute.xlu0 %828
    %v831 = vmul.f32 %v825, %v829
    %833 = vrot.lane.b32.xlu0 %v831, 32
    %v834 = vpop.permute.xlu0 %833
    %v836 = vadd.f32 %v826, %v834
    %v837 = vtanh.pop %v836
    %839 = vrot.lane.b32.xlu0 %v837, 64
    %v840 = vpop.permute.xlu0 %839
    %v842 = vmul.f32 %v825, %v840
    %844 = vrot.lane.b32.xlu0 %v842, 32
    %v845 = vpop.permute.xlu0 %844
    %847 = vst.msk [vmem:[#allocation2 + $0xe] sm:$0x3] %vm237, %v845
    %848 = vrot.lane.b32.xlu0 %v842, 64
    %v849 = vpop.permute.xlu0 %848
    %851 = vst.msk [vmem:[#allocation2 - $0x2] sm:$0xc] %vm242, %v849
    %v852 = vld [vmem:[#allocation2] sm:$0xff]
    %v853 = vld [vmem:[#allocation2 + $0x8] sm:$0xff]
    %v854 = vpack.c.bf16 %v853, %v852
    %v855 = vld [vmem:[#allocation10] sm:$0xff]
    %v856 = vld [vmem:[#allocation10 + $0x8] sm:$0xff]
    %v857 = vld [vmem:[#allocation10 + $0x10] sm:$0xff]
    %v858 = vld [vmem:[#allocation10 + $0x18] sm:$0xff]
    %v859 = vld [vmem:[#allocation10 + $0x20] sm:$0xff]
    %v860 = vld [vmem:[#allocation10 + $0x28] sm:$0xff]
    %v861 = vld [vmem:[#allocation10 + $0x30] sm:$0xff]
    %v862 = vld [vmem:[#allocation10 + $0x38] sm:$0xff]
    %v863 = vld [vmem:[%s6] sm:$0x3]
    %v865 = vlaneseq
    %v866 = vshrl.u32 %v865, 7
    %v867 = vsub.s32 0, %v866
    %v868 = vrot.slane %v863, %v867
    %v869 = vlaneseq
    %v870 = vshrl.u32 %v869, 7
    %v871 = vsub.s32 1, %v870
    %v872 = vrot.slane %v863, %v871
    %v883 = vunpack.c.l.b16 %v855
    %v884 = vunpack.c.h.b16 %v855
    %v885 = vunpack.c.l.b16 %v856
    %v886 = vunpack.c.h.b16 %v856
    %v887 = vunpack.c.l.b16 %v857
    %v888 = vunpack.c.h.b16 %v857
    %v889 = vunpack.c.l.b16 %v858
    %v890 = vunpack.c.h.b16 %v858
    %v891 = vunpack.c.l.b16 %v859
    %v892 = vunpack.c.h.b16 %v859
    %v893 = vunpack.c.l.b16 %v860
    %v894 = vunpack.c.h.b16 %v860
    %v895 = vunpack.c.l.b16 %v861
    %v896 = vunpack.c.h.b16 %v861
    %v897 = vunpack.c.l.b16 %v862
    %v898 = vunpack.c.h.b16 %v862
    %v899 = vpack.c.b16 %v885, %v883
    %v900 = vpack.c.b16 %v886, %v884
    %v901 = vpack.c.b16 %v889, %v887
    %v902 = vpack.c.b16 %v890, %v888
    %v903 = vpack.c.b16 %v893, %v891
    %v904 = vpack.c.b16 %v894, %v892
    %v905 = vpack.c.b16 %v897, %v895
    %v906 = vpack.c.b16 %v898, %v896
    %vm915 = vcmask 523264
    %v917 = vsel %vm915, %v854, 0
    %919 = vmatprep.subr.bf16.mxu0 %v900
    %920 = vmatpush1.bf16.msra.mxu0 %v899
    %921 = vmatprep.subr.bf16.mxu0 %v902
    %922 = vmatpush1.bf16.msra.mxu0 %v901
    %923 = vmatprep.subr.bf16.mxu0 %v904
    %924 = vmatpush1.bf16.msra.mxu0 %v903
    %925 = vmatprep.subr.bf16.mxu0 %v906
    %926 = vmatpush1.bf16.msra.mxu0 %v905
    %927 = vmatprep.subr.bf16.mxu0 0
    %928 = vmatpush1.bf16.msra.mxu0 0
    %929 = vmatprep.subr.bf16.mxu0 0
    %930 = vmatpush1.bf16.msra.mxu0 0
    %931 = vmatprep.subr.bf16.mxu0 0
    %932 = vmatpush1.bf16.msra.mxu0 0
    %933 = vmatprep.subr.bf16.mxu0 0
    %934 = vmatpush1.bf16.msra.mxu0 0
    %935 = vmatprep.subr.bf16.mxu0 0
    %936 = vmatpush1.bf16.msra.mxu0 0
    %937 = vmatprep.subr.bf16.mxu0 0
    %938 = vmatpush1.bf16.msra.mxu0 0
    %939 = vmatprep.subr.bf16.mxu0 0
    %940 = vmatpush1.bf16.msra.mxu0 0
    %941 = vmatprep.subr.bf16.mxu0 0
    %942 = vmatpush1.bf16.msra.mxu0 0
    %943 = vmatprep.subr.bf16.mxu0 0
    %944 = vmatpush1.bf16.msra.mxu0 0
    %945 = vmatprep.subr.bf16.mxu0 0
    %946 = vmatpush1.bf16.msra.mxu0 0
    %947 = vmatprep.subr.bf16.mxu0 0
    %948 = vmatpush1.bf16.msra.mxu0 0
    %949 = vmatprep.subr.bf16.mxu0 0
    %950 = vmatpush1.bf16.msra.mxu0 0
    %951 = vmatprep.mubr.bf16.mxu0 0
    %952 = vmatmul.mubr.bf16.gmra.mrb[0].mxu0 %v917
    %v953 = vpop.f32.mrb[0].mxu0
    %v954 = vadd.f32 %v868, %v953
    %v955 = vpop.f32.mrb[0].mxu0
    %v956 = vadd.f32 %v872, %v955
    %v957 = vpop.f32.mrb[0].mxu0
    %v958 = vadd.f32 %v868, %v957
    %v959 = vpop.f32.mrb[0].mxu0
    %v960 = vadd.f32 %v872, %v959
    %961 = vdwg.mxu0
    %v962 = vld [vmem:[#allocation12] sm:$0xff]
    %v963 = vld [vmem:[#allocation12 + $0x8] sm:$0xff]
    %v964 = vld [vmem:[#allocation12 + $0x10] sm:$0xff]
    %v965 = vld [vmem:[#allocation12 + $0x18] sm:$0xff]
    %v967 = vrot.slane %v960, 4
    %v969 = vsel %vm211, %v954, %v967
    %v970 = vtanh.pop %v969
    %v971 = vmul.f32 %v970, %v121
    %v972 = vadd.f32 %v971, %v122
    %v973 = vmul.f32 %v972, 0.0
    %975 = vrot.lane.b32.xlu0 %v972, 64
    %v976 = vpop.permute.xlu0 %975
    %v978 = vmul.f32 %v972, %v976
    %980 = vrot.lane.b32.xlu0 %v978, 32
    %v981 = vpop.permute.xlu0 %980
    %v983 = vadd.f32 %v973, %v981
    %v984 = vtanh.pop %v983
    %986 = vrot.lane.b32.xlu0 %v984, 64
    %v987 = vpop.permute.xlu0 %986
    %v989 = vmul.f32 %v972, %v987
    %v992 = vunpack.c.l.s4 1983009808
    %v993 = vunpack.c.0.s8 %v992
    %v994 = vlaneseq
    %v995 = vshrl.u32 %v994, 7
    %v996 = vsub.s32 %v993, %v995
    %v997 = vrot.slane %v989, %v996
    %998 = vrot.lane.b32.xlu0 %v997, 32
    %v999 = vpop.permute.xlu0 %998
    %1001 = vst.msk [vmem:[#allocation3] sm:$0x3] %vm237, %v999
    %v1002 = vcombine.high %v997, %v997
    %vm1004 = vcmask 1042176
    %1005 = vst.msk [vmem:[#allocation3 + $0x6] sm:$0x3] %vm1004, %v1002
    %v1007 = vrot.slane %v954, 2
    %v1009 = vrot.slane %v960, 2
    %v1011 = vsel %vm211, %v1007, %v1009
    %v1012 = vpack.c.bf16 %v989, %v989
    %1014 = vrot.lane.b32.xlu0 %v1012, 32
    %v1015 = vpop.permute.xlu0 %1014
    %v1020 = vunpack.c.l.b16 %v962
    %v1021 = vunpack.c.h.b16 %v962
    %v1022 = vunpack.c.l.b16 %v963
    %v1023 = vunpack.c.h.b16 %v963
    %v1024 = vunpack.c.l.b16 %v964
    %v1025 = vunpack.c.h.b16 %v964
    %v1026 = vunpack.c.l.b16 %v965
    %v1027 = vunpack.c.h.b16 %v965
    %v1028 = vpack.c.b16 %v1022, %v1020
    %v1029 = vpack.c.b16 %v1023, %v1021
    %v1030 = vpack.c.b16 %v1026, %v1024
    %v1031 = vpack.c.b16 %v1027, %v1025
    %v1037 = vsel %vm274, %v1015, 0
    %1039 = vmatprep.subr.bf16.mxu0 %v1029
    %1040 = vmatpush1.bf16.msra.mxu0 %v1028
    %1041 = vmatprep.subr.bf16.mxu0 %v1031
    %1042 = vmatpush1.bf16.msra.mxu0 %v1030
    %1043 = vmatprep.subr.bf16.mxu0 0
    %1044 = vmatpush1.bf16.msra.mxu0 0
    %1045 = vmatprep.subr.bf16.mxu0 0
    %1046 = vmatpush1.bf16.msra.mxu0 0
    %1047 = vmatprep.subr.bf16.mxu0 0
    %1048 = vmatpush1.bf16.msra.mxu0 0
    %1049 = vmatprep.subr.bf16.mxu0 0
    %1050 = vmatpush1.bf16.msra.mxu0 0
    %1051 = vmatprep.subr.bf16.mxu0 0
    %1052 = vmatpush1.bf16.msra.mxu0 0
    %1053 = vmatprep.subr.bf16.mxu0 0
    %1054 = vmatpush1.bf16.msra.mxu0 0
    %1055 = vmatprep.subr.bf16.mxu0 0
    %1056 = vmatpush1.bf16.msra.mxu0 0
    %1057 = vmatprep.subr.bf16.mxu0 0
    %1058 = vmatpush1.bf16.msra.mxu0 0
    %1059 = vmatprep.subr.bf16.mxu0 0
    %1060 = vmatpush1.bf16.msra.mxu0 0
    %1061 = vmatprep.subr.bf16.mxu0 0
    %1062 = vmatpush1.bf16.msra.mxu0 0
    %1063 = vmatprep.subr.bf16.mxu0 0
    %1064 = vmatpush1.bf16.msra.mxu0 0
    %1065 = vmatprep.subr.bf16.mxu0 0
    %1066 = vmatpush1.bf16.msra.mxu0 0
    %1067 = vmatprep.subr.bf16.mxu0 0
    %1068 = vmatpush1.bf16.msra.mxu0 0
    %1069 = vmatprep.subr.bf16.mxu0 0
    %1070 = vmatpush1.bf16.msra.mxu0 0
    %1071 = vmatprep.mubr.bf16.mxu0 0
    %1072 = vmatmul.mubr.bf16.gmra.mrb[0].mxu0 %v1037
    %v1073 = vpop.f32.mrb[0].mxu0
    %v1074 = vadd.f32 0.0, %v1073
    %v1075 = vpop.f32.mrb[0].mxu0
    %v1076 = vadd.f32 0.0, %v1075
    %v1077 = vpop.f32.mrb[0].mxu0
    %v1078 = vpop.f32.mrb[0].mxu0
    %1079 = vdwg.mxu0
    %v1080 = vsel %vm320, %v1074, %v1076
    %v1081 = vadd.f32 %v1011, %v1080
    %v1082 = vtanh.pop %v1081
    %v1083 = vmul.f32 %v1082, %v121
    %v1084 = vadd.f32 %v1083, %v122
    %v1085 = vmul.f32 %v1084, %v983
    %1087 = vrot.lane.b32.xlu0 %v1084, 64
    %v1088 = vpop.permute.xlu0 %1087
    %v1090 = vmul.f32 %v1084, %v1088
    %1092 = vrot.lane.b32.xlu0 %v1090, 32
    %v1093 = vpop.permute.xlu0 %1092
    %v1095 = vadd.f32 %v1085, %v1093
    %v1096 = vtanh.pop %v1095
    %1098 = vrot.lane.b32.xlu0 %v1096, 64
    %v1099 = vpop.permute.xlu0 %1098
    %v1101 = vmul.f32 %v1084, %v1099
    %v1104 = vunpack.c.l.s4 1983009808
    %v1105 = vunpack.c.0.s8 %v1104
    %v1106 = vlaneseq
    %v1107 = vshrl.u32 %v1106, 7
    %v1108 = vsub.s32 %v1105, %v1107
    %v1109 = vrot.slane %v1101, %v1108
    %1110 = vrot.lane.b32.xlu0 %v1109, 96
    %v1111 = vpop.permute.xlu0 %1110
    %vm1113 = vcmask 779776
    %1114 = vst.msk [vmem:[#allocation3] sm:$0x3] %vm1113, %v1111
    %v1115 = vcombine.high %v1109, %v1109
    %1116 = vrot.lane.b32.xlu0 %v1115, 64
    %v1117 = vpop.permute.xlu0 %1116
    %vm1119 = vcmask 517376
    %1120 = vst.msk [vmem:[#allocation3 + $0x6] sm:$0x3] %vm1119, %v1117
    %v1121 = vrot.slane %v954, 4
    %v1123 = vsel %vm211, %v1121, %v960
    %v1124 = vpack.c.bf16 %v1101, %v1101
    %1126 = vrot.lane.b32.xlu0 %v1124, 32
    %v1127 = vpop.permute.xlu0 %1126
    %v1129 = vsel %vm274, %v1127, 0
    %1131 = vmatprep.subr.bf16.mxu0 %v1029
    %1132 = vmatpush1.bf16.msra.mxu0 %v1028
    %1133 = vmatprep.subr.bf16.mxu0 %v1031
    %1134 = vmatpush1.bf16.msra.mxu0 %v1030
    %1135 = vmatprep.subr.bf16.mxu0 0
    %1136 = vmatpush1.bf16.msra.mxu0 0
    %1137 = vmatprep.subr.bf16.mxu0 0
    %1138 = vmatpush1.bf16.msra.mxu0 0
    %1139 = vmatprep.subr.bf16.mxu0 0
    %1140 = vmatpush1.bf16.msra.mxu0 0
    %1141 = vmatprep.subr.bf16.mxu0 0
    %1142 = vmatpush1.bf16.msra.mxu0 0
    %1143 = vmatprep.subr.bf16.mxu0 0
    %1144 = vmatpush1.bf16.msra.mxu0 0
    %1145 = vmatprep.subr.bf16.mxu0 0
    %1146 = vmatpush1.bf16.msra.mxu0 0
    %1147 = vmatprep.subr.bf16.mxu0 0
    %1148 = vmatpush1.bf16.msra.mxu0 0
    %1149 = vmatprep.subr.bf16.mxu0 0
    %1150 = vmatpush1.bf16.msra.mxu0 0
    %1151 = vmatprep.subr.bf16.mxu0 0
    %1152 = vmatpush1.bf16.msra.mxu0 0
    %1153 = vmatprep.subr.bf16.mxu0 0
    %1154 = vmatpush1.bf16.msra.mxu0 0
    %1155 = vmatprep.subr.bf16.mxu0 0
    %1156 = vmatpush1.bf16.msra.mxu0 0
    %1157 = vmatprep.subr.bf16.mxu0 0
    %1158 = vmatpush1.bf16.msra.mxu0 0
    %1159 = vmatprep.subr.bf16.mxu0 0
    %1160 = vmatpush1.bf16.msra.mxu0 0
    %1161 = vmatprep.subr.bf16.mxu0 0
    %1162 = vmatpush1.bf16.msra.mxu0 0
    %1163 = vmatprep.mubr.bf16.mxu0 0
    %1164 = vmatmul.mubr.bf16.gmra.mrb[0].mxu0 %v1129
    %v1165 = vpop.f32.mrb[0].mxu0
    %v1166 = vadd.f32 0.0, %v1165
    %v1167 = vpop.f32.mrb[0].mxu0
    %v1168 = vadd.f32 0.0, %v1167
    %v1169 = vpop.f32.mrb[0].mxu0
    %v1170 = vpop.f32.mrb[0].mxu0
    %1171 = vdwg.mxu0
    %v1172 = vsel %vm320, %v1166, %v1168
    %v1173 = vadd.f32 %v1123, %v1172
    %v1174 = vtanh.pop %v1173
    %v1175 = vmul.f32 %v1174, %v121
    %v1176 = vadd.f32 %v1175, %v122
    %v1177 = vmul.f32 %v1176, %v1095
    %1179 = vrot.lane.b32.xlu0 %v1176, 64
    %v1180 = vpop.permute.xlu0 %1179
    %v1182 = vmul.f32 %v1176, %v1180
    %1184 = vrot.lane.b32.xlu0 %v1182, 32
    %v1185 = vpop.permute.xlu0 %1184
    %v1187 = vadd.f32 %v1177, %v1185
    %v1188 = vtanh.pop %v1187
    %1190 = vrot.lane.b32.xlu0 %v1188, 64
    %v1191 = vpop.permute.xlu0 %1190
    %v1193 = vmul.f32 %v1176, %v1191
    %v1196 = vunpack.c.l.s4 1983009808
    %v1197 = vunpack.c.0.s8 %v1196
    %v1198 = vlaneseq
    %v1199 = vshrl.u32 %v1198, 7
    %v1200 = vsub.s32 %v1197, %v1199
    %v1201 = vrot.slane %v1193, %v1200
    %1202 = vrot.lane.b32.xlu0 %v1201, 32
    %v1203 = vpop.permute.xlu0 %1202
    %1205 = vst.msk [vmem:[#allocation3 + $0x2] sm:$0x3] %vm237, %v1203
    %v1206 = vcombine.high %v1201, %v1201
    %1208 = vst.msk [vmem:[#allocation3 + $0x4] sm:$0x3] %vm1004, %v1206
    %v1209 = vrot.slane %v954, 6
    %v1211 = vrot.slane %v960, 6
    %v1213 = vsel %vm211, %v1209, %v1211
    %v1214 = vpack.c.bf16 %v1193, %v1193
    %1216 = vrot.lane.b32.xlu0 %v1214, 32
    %v1217 = vpop.permute.xlu0 %1216
    %v1219 = vsel %vm274, %v1217, 0
    %1221 = vmatprep.subr.bf16.mxu0 %v1029
    %1222 = vmatpush1.bf16.msra.mxu0 %v1028
    %1223 = vmatprep.subr.bf16.mxu0 %v1031
    %1224 = vmatpush1.bf16.msra.mxu0 %v1030
    %1225 = vmatprep.subr.bf16.mxu0 0
    %1226 = vmatpush1.bf16.msra.mxu0 0
    %1227 = vmatprep.subr.bf16.mxu0 0
    %1228 = vmatpush1.bf16.msra.mxu0 0
    %1229 = vmatprep.subr.bf16.mxu0 0
    %1230 = vmatpush1.bf16.msra.mxu0 0
    %1231 = vmatprep.subr.bf16.mxu0 0
    %1232 = vmatpush1.bf16.msra.mxu0 0
    %1233 = vmatprep.subr.bf16.mxu0 0
    %1234 = vmatpush1.bf16.msra.mxu0 0
    %1235 = vmatprep.subr.bf16.mxu0 0
    %1236 = vmatpush1.bf16.msra.mxu0 0
    %1237 = vmatprep.subr.bf16.mxu0 0
    %1238 = vmatpush1.bf16.msra.mxu0 0
    %1239 = vmatprep.subr.bf16.mxu0 0
    %1240 = vmatpush1.bf16.msra.mxu0 0
    %1241 = vmatprep.subr.bf16.mxu0 0
    %1242 = vmatpush1.bf16.msra.mxu0 0
    %1243 = vmatprep.subr.bf16.mxu0 0
    %1244 = vmatpush1.bf16.msra.mxu0 0
    %1245 = vmatprep.subr.bf16.mxu0 0
    %1246 = vmatpush1.bf16.msra.mxu0 0
    %1247 = vmatprep.subr.bf16.mxu0 0
    %1248 = vmatpush1.bf16.msra.mxu0 0
    %1249 = vmatprep.subr.bf16.mxu0 0
    %1250 = vmatpush1.bf16.msra.mxu0 0
    %1251 = vmatprep.subr.bf16.mxu0 0
    %1252 = vmatpush1.bf16.msra.mxu0 0
    %1253 = vmatprep.mubr.bf16.mxu0 0
    %1254 = vmatmul.mubr.bf16.gmra.mrb[0].mxu0 %v1219
    %v1255 = vpop.f32.mrb[0].mxu0
    %v1256 = vadd.f32 0.0, %v1255
    %v1257 = vpop.f32.mrb[0].mxu0
    %v1258 = vadd.f32 0.0, %v1257
    %v1259 = vpop.f32.mrb[0].mxu0
    %v1260 = vpop.f32.mrb[0].mxu0
    %1261 = vdwg.mxu0
    %v1262 = vsel %vm320, %v1256, %v1258
    %v1263 = vadd.f32 %v1213, %v1262
    %v1264 = vtanh.pop %v1263
    %v1265 = vmul.f32 %v1264, %v121
    %v1266 = vadd.f32 %v1265, %v122
    %v1267 = vmul.f32 %v1266, %v1187
    %1269 = vrot.lane.b32.xlu0 %v1266, 64
    %v1270 = vpop.permute.xlu0 %1269
    %v1272 = vmul.f32 %v1266, %v1270
    %1274 = vrot.lane.b32.xlu0 %v1272, 32
    %v1275 = vpop.permute.xlu0 %1274
    %v1277 = vadd.f32 %v1267, %v1275
    %v1278 = vtanh.pop %v1277
    %1280 = vrot.lane.b32.xlu0 %v1278, 64
    %v1281 = vpop.permute.xlu0 %1280
    %v1283 = vmul.f32 %v1266, %v1281
    %v1286 = vunpack.c.l.s4 1983009808
    %v1287 = vunpack.c.0.s8 %v1286
    %v1288 = vlaneseq
    %v1289 = vshrl.u32 %v1288, 7
    %v1290 = vsub.s32 %v1287, %v1289
    %v1291 = vrot.slane %v1283, %v1290
    %1292 = vrot.lane.b32.xlu0 %v1291, 96
    %v1293 = vpop.permute.xlu0 %1292
    %1295 = vst.msk [vmem:[#allocation3 + $0x2] sm:$0x3] %vm1113, %v1293
    %v1296 = vcombine.high %v1291, %v1291
    %1297 = vrot.lane.b32.xlu0 %v1296, 64
    %v1298 = vpop.permute.xlu0 %1297
    %1300 = vst.msk [vmem:[#allocation3 + $0x4] sm:$0x3] %vm1119, %v1298
    %v1302 = vrot.slane %v956, 4
    %v1304 = vsel %vm211, %v958, %v1302
    %v1305 = vpack.c.bf16 %v1283, %v1283
    %1307 = vrot.lane.b32.xlu0 %v1305, 32
    %v1308 = vpop.permute.xlu0 %1307
    %v1310 = vsel %vm274, %v1308, 0
    %1312 = vmatprep.subr.bf16.mxu0 %v1029
    %1313 = vmatpush1.bf16.msra.mxu0 %v1028
    %1314 = vmatprep.subr.bf16.mxu0 %v1031
    %1315 = vmatpush1.bf16.msra.mxu0 %v1030
    %1316 = vmatprep.subr.bf16.mxu0 0
    %1317 = vmatpush1.bf16.msra.mxu0 0
    %1318 = vmatprep.subr.bf16.mxu0 0
    %1319 = vmatpush1.bf16.msra.mxu0 0
    %1320 = vmatprep.subr.bf16.mxu0 0
    %1321 = vmatpush1.bf16.msra.mxu0 0
    %1322 = vmatprep.subr.bf16.mxu0 0
    %1323 = vmatpush1.bf16.msra.mxu0 0
    %1324 = vmatprep.subr.bf16.mxu0 0
    %1325 = vmatpush1.bf16.msra.mxu0 0
    %1326 = vmatprep.subr.bf16.mxu0 0
    %1327 = vmatpush1.bf16.msra.mxu0 0
    %1328 = vmatprep.subr.bf16.mxu0 0
    %1329 = vmatpush1.bf16.msra.mxu0 0
    %1330 = vmatprep.subr.bf16.mxu0 0
    %1331 = vmatpush1.bf16.msra.mxu0 0
    %1332 = vmatprep.subr.bf16.mxu0 0
    %1333 = vmatpush1.bf16.msra.mxu0 0
    %1334 = vmatprep.subr.bf16.mxu0 0
    %1335 = vmatpush1.bf16.msra.mxu0 0
    %1336 = vmatprep.subr.bf16.mxu0 0
    %1337 = vmatpush1.bf16.msra.mxu0 0
    %1338 = vmatprep.subr.bf16.mxu0 0
    %1339 = vmatpush1.bf16.msra.mxu0 0
    %1340 = vmatprep.subr.bf16.mxu0 0
    %1341 = vmatpush1.bf16.msra.mxu0 0
    %1342 = vmatprep.subr.bf16.mxu0 0
    %1343 = vmatpush1.bf16.msra.mxu0 0
    %1344 = vmatprep.mubr.bf16.mxu0 0
    %1345 = vmatmul.mubr.bf16.gmra.mrb[0].mxu0 %v1310
    %v1346 = vpop.f32.mrb[0].mxu0
    %v1347 = vadd.f32 0.0, %v1346
    %v1348 = vpop.f32.mrb[0].mxu0
    %v1349 = vadd.f32 0.0, %v1348
    %v1350 = vpop.f32.mrb[0].mxu0
    %v1351 = vpop.f32.mrb[0].mxu0
    %1352 = vdwg.mxu0
    %v1353 = vsel %vm320, %v1347, %v1349
    %v1354 = vadd.f32 %v1304, %v1353
    %v1355 = vtanh.pop %v1354
    %v1356 = vmul.f32 %v1355, %v121
    %v1357 = vadd.f32 %v1356, %v122
    %v1358 = vmul.f32 %v1357, %v1277
    %1360 = vrot.lane.b32.xlu0 %v1357, 64
    %v1361 = vpop.permute.xlu0 %1360
    %v1363 = vmul.f32 %v1357, %v1361
    %1365 = vrot.lane.b32.xlu0 %v1363, 32
    %v1366 = vpop.permute.xlu0 %1365
    %v1368 = vadd.f32 %v1358, %v1366
    %v1369 = vtanh.pop %v1368
    %1371 = vrot.lane.b32.xlu0 %v1369, 64
    %v1372 = vpop.permute.xlu0 %1371
    %v1374 = vmul.f32 %v1357, %v1372
    %v1377 = vunpack.c.l.s4 1983009808
    %v1378 = vunpack.c.0.s8 %v1377
    %v1379 = vlaneseq
    %v1380 = vshrl.u32 %v1379, 7
    %v1381 = vsub.s32 %v1378, %v1380
    %v1382 = vrot.slane %v1374, %v1381
    %1383 = vrot.lane.b32.xlu0 %v1382, 32
    %v1384 = vpop.permute.xlu0 %1383
    %1386 = vst.msk [vmem:[#allocation3 + $0x4] sm:$0x3] %vm237, %v1384
    %v1387 = vcombine.high %v1382, %v1382
    %1389 = vst.msk [vmem:[#allocation3 + $0x2] sm:$0x3] %vm1004, %v1387
    %v1391 = vrot.slane %v958, 2
    %v1393 = vrot.slane %v956, 2
    %v1395 = vsel %vm211, %v1391, %v1393
    %v1396 = vpack.c.bf16 %v1374, %v1374
    %1398 = vrot.lane.b32.xlu0 %v1396, 32
    %v1399 = vpop.permute.xlu0 %1398
    %v1401 = vsel %vm274, %v1399, 0
    %1403 = vmatprep.subr.bf16.mxu0 %v1029
    %1404 = vmatpush1.bf16.msra.mxu0 %v1028
    %1405 = vmatprep.subr.bf16.mxu0 %v1031
    %1406 = vmatpush1.bf16.msra.mxu0 %v1030
    %1407 = vmatprep.subr.bf16.mxu0 0
    %1408 = vmatpush1.bf16.msra.mxu0 0
    %1409 = vmatprep.subr.bf16.mxu0 0
    %1410 = vmatpush1.bf16.msra.mxu0 0
    %1411 = vmatprep.subr.bf16.mxu0 0
    %1412 = vmatpush1.bf16.msra.mxu0 0
    %1413 = vmatprep.subr.bf16.mxu0 0
    %1414 = vmatpush1.bf16.msra.mxu0 0
    %1415 = vmatprep.subr.bf16.mxu0 0
    %1416 = vmatpush1.bf16.msra.mxu0 0
    %1417 = vmatprep.subr.bf16.mxu0 0
    %1418 = vmatpush1.bf16.msra.mxu0 0
    %1419 = vmatprep.subr.bf16.mxu0 0
    %1420 = vmatpush1.bf16.msra.mxu0 0
    %1421 = vmatprep.subr.bf16.mxu0 0
    %1422 = vmatpush1.bf16.msra.mxu0 0
    %1423 = vmatprep.subr.bf16.mxu0 0
    %1424 = vmatpush1.bf16.msra.mxu0 0
    %1425 = vmatprep.subr.bf16.mxu0 0
    %1426 = vmatpush1.bf16.msra.mxu0 0
    %1427 = vmatprep.subr.bf16.mxu0 0
    %1428 = vmatpush1.bf16.msra.mxu0 0
    %1429 = vmatprep.subr.bf16.mxu0 0
    %1430 = vmatpush1.bf16.msra.mxu0 0
    %1431 = vmatprep.subr.bf16.mxu0 0
    %1432 = vmatpush1.bf16.msra.mxu0 0
    %1433 = vmatprep.subr.bf16.mxu0 0
    %1434 = vmatpush1.bf16.msra.mxu0 0
    %1435 = vmatprep.mubr.bf16.mxu0 0
    %1436 = vmatmul.mubr.bf16.gmra.mrb[0].mxu0 %v1401
    %v1437 = vpop.f32.mrb[0].mxu0
    %v1438 = vadd.f32 0.0, %v1437
    %v1439 = vpop.f32.mrb[0].mxu0
    %v1440 = vadd.f32 0.0, %v1439
    %v1441 = vpop.f32.mrb[0].mxu0
    %v1442 = vpop.f32.mrb[0].mxu0
    %1443 = vdwg.mxu0
    %v1444 = vsel %vm320, %v1438, %v1440
    %v1445 = vadd.f32 %v1395, %v1444
    %v1446 = vtanh.pop %v1445
    %v1447 = vmul.f32 %v1446, %v121
    %v1448 = vadd.f32 %v1447, %v122
    %v1449 = vmul.f32 %v1448, %v1368
    %1451 = vrot.lane.b32.xlu0 %v1448, 64
    %v1452 = vpop.permute.xlu0 %1451
    %v1454 = vmul.f32 %v1448, %v1452
    %1456 = vrot.lane.b32.xlu0 %v1454, 32
    %v1457 = vpop.permute.xlu0 %1456
    %v1459 = vadd.f32 %v1449, %v1457
    %v1460 = vtanh.pop %v1459
    %1462 = vrot.lane.b32.xlu0 %v1460, 64
    %v1463 = vpop.permute.xlu0 %1462
    %v1465 = vmul.f32 %v1448, %v1463
    %v1468 = vunpack.c.l.s4 1983009808
    %v1469 = vunpack.c.0.s8 %v1468
    %v1470 = vlaneseq
    %v1471 = vshrl.u32 %v1470, 7
    %v1472 = vsub.s32 %v1469, %v1471
    %v1473 = vrot.slane %v1465, %v1472
    %1474 = vrot.lane.b32.xlu0 %v1473, 96
    %v1475 = vpop.permute.xlu0 %1474
    %1477 = vst.msk [vmem:[#allocation3 + $0x4] sm:$0x3] %vm1113, %v1475
    %v1478 = vcombine.high %v1473, %v1473
    %1479 = vrot.lane.b32.xlu0 %v1478, 64
    %v1480 = vpop.permute.xlu0 %1479
    %1482 = vst.msk [vmem:[#allocation3 + $0x2] sm:$0x3] %vm1119, %v1480
    %v1483 = vrot.slane %v958, 4
    %v1485 = vsel %vm211, %v1483, %v956
    %v1486 = vpack.c.bf16 %v1465, %v1465
    %1488 = vrot.lane.b32.xlu0 %v1486, 32
    %v1489 = vpop.permute.xlu0 %1488
    %v1491 = vsel %vm274, %v1489, 0
    %1493 = vmatprep.subr.bf16.mxu0 %v1029
    %1494 = vmatpush1.bf16.msra.mxu0 %v1028
    %1495 = vmatprep.subr.bf16.mxu0 %v1031
    %1496 = vmatpush1.bf16.msra.mxu0 %v1030
    %1497 = vmatprep.subr.bf16.mxu0 0
    %1498 = vmatpush1.bf16.msra.mxu0 0
    %1499 = vmatprep.subr.bf16.mxu0 0
    %1500 = vmatpush1.bf16.msra.mxu0 0
    %1501 = vmatprep.subr.bf16.mxu0 0
    %1502 = vmatpush1.bf16.msra.mxu0 0
    %1503 = vmatprep.subr.bf16.mxu0 0
    %1504 = vmatpush1.bf16.msra.mxu0 0
    %1505 = vmatprep.subr.bf16.mxu0 0
    %1506 = vmatpush1.bf16.msra.mxu0 0
    %1507 = vmatprep.subr.bf16.mxu0 0
    %1508 = vmatpush1.bf16.msra.mxu0 0
    %1509 = vmatprep.subr.bf16.mxu0 0
    %1510 = vmatpush1.bf16.msra.mxu0 0
    %1511 = vmatprep.subr.bf16.mxu0 0
    %1512 = vmatpush1.bf16.msra.mxu0 0
    %1513 = vmatprep.subr.bf16.mxu0 0
    %1514 = vmatpush1.bf16.msra.mxu0 0
    %1515 = vmatprep.subr.bf16.mxu0 0
    %1516 = vmatpush1.bf16.msra.mxu0 0
    %1517 = vmatprep.subr.bf16.mxu0 0
    %1518 = vmatpush1.bf16.msra.mxu0 0
    %1519 = vmatprep.subr.bf16.mxu0 0
    %1520 = vmatpush1.bf16.msra.mxu0 0
    %1521 = vmatprep.subr.bf16.mxu0 0
    %1522 = vmatpush1.bf16.msra.mxu0 0
    %1523 = vmatprep.subr.bf16.mxu0 0
    %1524 = vmatpush1.bf16.msra.mxu0 0
    %1525 = vmatprep.mubr.bf16.mxu0 0
    %1526 = vmatmul.mubr.bf16.gmra.mrb[0].mxu0 %v1491
    %v1527 = vpop.f32.mrb[0].mxu0
    %v1528 = vadd.f32 0.0, %v1527
    %v1529 = vpop.f32.mrb[0].mxu0
    %v1530 = vadd.f32 0.0, %v1529
    %v1531 = vpop.f32.mrb[0].mxu0
    %v1532 = vpop.f32.mrb[0].mxu0
    %1533 = vdwg.mxu0
    %v1534 = vsel %vm320, %v1528, %v1530
    %v1535 = vadd.f32 %v1485, %v1534
    %v1536 = vtanh.pop %v1535
    %v1537 = vmul.f32 %v1536, %v121
    %v1538 = vadd.f32 %v1537, %v122
    %v1539 = vmul.f32 %v1538, %v1459
    %1541 = vrot.lane.b32.xlu0 %v1538, 64
    %v1542 = vpop.permute.xlu0 %1541
    %v1544 = vmul.f32 %v1538, %v1542
    %1546 = vrot.lane.b32.xlu0 %v1544, 32
    %v1547 = vpop.permute.xlu0 %1546
    %v1549 = vadd.f32 %v1539, %v1547
    %v1550 = vtanh.pop %v1549
    %1552 = vrot.lane.b32.xlu0 %v1550, 64
    %v1553 = vpop.permute.xlu0 %1552
    %v1555 = vmul.f32 %v1538, %v1553
    %v1558 = vunpack.c.l.s4 1983009808
    %v1559 = vunpack.c.0.s8 %v1558
    %v1560 = vlaneseq
    %v1561 = vshrl.u32 %v1560, 7
    %v1562 = vsub.s32 %v1559, %v1561
    %v1563 = vrot.slane %v1555, %v1562
    %1564 = vrot.lane.b32.xlu0 %v1563, 32
    %v1565 = vpop.permute.xlu0 %1564
    %1567 = vst.msk [vmem:[#allocation3 + $0x6] sm:$0x3] %vm237, %v1565
    %v1568 = vcombine.high %v1563, %v1563
    %1570 = vst.msk [vmem:[#allocation3] sm:$0x3] %vm1004, %v1568
    %v1571 = vrot.slane %v958, 6
    %v1573 = vrot.slane %v956, 6
    %v1575 = vsel %vm211, %v1571, %v1573
    %v1576 = vpack.c.bf16 %v1555, %v1555
    %1578 = vrot.lane.b32.xlu0 %v1576, 32
    %v1579 = vpop.permute.xlu0 %1578
    %v1581 = vsel %vm274, %v1579, 0
    %1583 = vmatprep.subr.bf16.mxu0 %v1029
    %1584 = vmatpush1.bf16.msra.mxu0 %v1028
    %1585 = vmatprep.subr.bf16.mxu0 %v1031
    %1586 = vmatpush1.bf16.msra.mxu0 %v1030
    %1587 = vmatprep.subr.bf16.mxu0 0
    %1588 = vmatpush1.bf16.msra.mxu0 0
    %1589 = vmatprep.subr.bf16.mxu0 0
    %1590 = vmatpush1.bf16.msra.mxu0 0
    %1591 = vmatprep.subr.bf16.mxu0 0
    %1592 = vmatpush1.bf16.msra.mxu0 0
    %1593 = vmatprep.subr.bf16.mxu0 0
    %1594 = vmatpush1.bf16.msra.mxu0 0
    %1595 = vmatprep.subr.bf16.mxu0 0
    %1596 = vmatpush1.bf16.msra.mxu0 0
    %1597 = vmatprep.subr.bf16.mxu0 0
    %1598 = vmatpush1.bf16.msra.mxu0 0
    %1599 = vmatprep.subr.bf16.mxu0 0
    %1600 = vmatpush1.bf16.msra.mxu0 0
    %1601 = vmatprep.subr.bf16.mxu0 0
    %1602 = vmatpush1.bf16.msra.mxu0 0
    %1603 = vmatprep.subr.bf16.mxu0 0
    %1604 = vmatpush1.bf16.msra.mxu0 0
    %1605 = vmatprep.subr.bf16.mxu0 0
    %1606 = vmatpush1.bf16.msra.mxu0 0
    %1607 = vmatprep.subr.bf16.mxu0 0
    %1608 = vmatpush1.bf16.msra.mxu0 0
    %1609 = vmatprep.subr.bf16.mxu0 0
    %1610 = vmatpush1.bf16.msra.mxu0 0
    %1611 = vmatprep.subr.bf16.mxu0 0
    %1612 = vmatpush1.bf16.msra.mxu0 0
    %1613 = vmatprep.subr.bf16.mxu0 0
    %1614 = vmatpush1.bf16.msra.mxu0 0
    %1615 = vmatprep.mubr.bf16.mxu0 0
    %1616 = vmatmul.mubr.bf16.gmra.mrb[0].mxu0 %v1581
    %v1617 = vpop.f32.mrb[0].mxu0
    %v1618 = vadd.f32 0.0, %v1617
    %v1619 = vpop.f32.mrb[0].mxu0
    %v1620 = vadd.f32 0.0, %v1619
    %v1621 = vpop.f32.mrb[0].mxu0
    %v1622 = vpop.f32.mrb[0].mxu0
    %1623 = vdwg.mxu0
    %v1624 = vsel %vm320, %v1618, %v1620
    %v1625 = vadd.f32 %v1575, %v1624
    %v1626 = vtanh.pop %v1625
    %v1627 = vmul.f32 %v1626, %v121
    %v1628 = vadd.f32 %v1627, %v122
    %v1629 = vmul.f32 %v1628, %v1549
    %1631 = vrot.lane.b32.xlu0 %v1628, 64
    %v1632 = vpop.permute.xlu0 %1631
    %v1634 = vmul.f32 %v1628, %v1632
    %1636 = vrot.lane.b32.xlu0 %v1634, 32
    %v1637 = vpop.permute.xlu0 %1636
    %v1639 = vadd.f32 %v1629, %v1637
    %v1640 = vtanh.pop %v1639
    %1642 = vrot.lane.b32.xlu0 %v1640, 64
    %v1643 = vpop.permute.xlu0 %1642
    %v1645 = vmul.f32 %v1628, %v1643
    %v1648 = vunpack.c.l.s4 1983009808
    %v1649 = vunpack.c.0.s8 %v1648
    %v1650 = vlaneseq
    %v1651 = vshrl.u32 %v1650, 7
    %v1652 = vsub.s32 %v1649, %v1651
    %v1653 = vrot.slane %v1645, %v1652
    %1654 = vrot.lane.b32.xlu0 %v1653, 96
    %v1655 = vpop.permute.xlu0 %1654
    %1657 = vst.msk [vmem:[#allocation3 + $0x6] sm:$0x3] %vm1113, %v1655
    %v1658 = vcombine.high %v1653, %v1653
    %1659 = vrot.lane.b32.xlu0 %v1658, 64
    %v1660 = vpop.permute.xlu0 %1659
    %1662 = vst.msk [vmem:[#allocation3] sm:$0x3] %vm1119, %v1660
    %v1663 = vld [vmem:[#allocation3] sm:$0xff]
    %v1665 = vcombine.high %v1663, %v1663
    %v1667 = vunpack.c.l.s4 1983009808
    %v1668 = vunpack.c.0.s8 %v1667
    %v1669 = vlaneseq
    %v1670 = vshrl.u32 %v1669, 7
    %v1671 = vsub.s32 %v1668, %v1670
    %v1672 = vrot.slane %v1663, %v1671
    %v1674 = vunpack.c.l.s4 1983009808
    %v1675 = vunpack.c.0.s8 %v1674
    %v1676 = vlaneseq
    %v1677 = vshrl.u32 %v1676, 7
    %v1678 = vsub.s32 %v1675, %v1677
    %v1679 = vrot.slane %v1665, %v1678
    %v1680 = vcombine.high %v1672, %v1672
    %v1681 = vcombine.high %v1679, %v1679
    %v1686 = vpack.c.bf16 %v1672, %v1672
    %v1687 = vpack.c.bf16 %v1680, %v1680
    %v1688 = vpack.c.bf16 %v1679, %v1679
    %v1689 = vpack.c.bf16 %v1681, %v1681
    %v1690 = vld [vmem:[#allocation13] sm:$0xf]
    %v1691 = vld [vmem:[#allocation13 + $0x4] sm:$0xf]
    %v1692 = vld [vmem:[#allocation13 + $0x8] sm:$0xf]
    %v1693 = vld [vmem:[#allocation13 + $0xc] sm:$0xf]
    %v1694 = vld [vmem:[#allocation13 + $0x10] sm:$0xf]
    %v1695 = vld [vmem:[#allocation13 + $0x14] sm:$0xf]
    %v1696 = vld [vmem:[#allocation13 + $0x18] sm:$0xf]
    %v1697 = vld [vmem:[#allocation13 + $0x1c] sm:$0xf]
    %v1698 = vld [vmem:[#allocation13 + $0x20] sm:$0xf]
    %v1699 = vld [vmem:[#allocation13 + $0x24] sm:$0xf]
    %v1700 = vld [vmem:[#allocation13 + $0x28] sm:$0xf]
    %v1701 = vld [vmem:[#allocation13 + $0x2c] sm:$0xf]
    %v1702 = vld [vmem:[#allocation13 + $0x30] sm:$0xf]
    %v1703 = vld [vmem:[#allocation13 + $0x34] sm:$0xf]
    %v1704 = vld [vmem:[#allocation13 + $0x38] sm:$0xf]
    %v1705 = vld [vmem:[#allocation13 + $0x3c] sm:$0xf]
    %v1706 = vld [vmem:[#allocation13 + $0x40] sm:$0xf]
    %v1707 = vld [vmem:[#allocation13 + $0x44] sm:$0xf]
    %v1708 = vld [vmem:[#allocation13 + $0x48] sm:$0xf]
    %v1709 = vld [vmem:[#allocation13 + $0x4c] sm:$0xf]
    %v1710 = vld [vmem:[#allocation13 + $0x50] sm:$0xf]
    %v1711 = vld [vmem:[#allocation13 + $0x54] sm:$0xf]
    %v1712 = vld [vmem:[#allocation13 + $0x58] sm:$0xf]
    %v1713 = vld [vmem:[#allocation13 + $0x5c] sm:$0xf]
    %v1714 = vld [vmem:[#allocation13 + $0x60] sm:$0xf]
    %v1715 = vld [vmem:[#allocation13 + $0x64] sm:$0xf]
    %v1716 = vld [vmem:[#allocation13 + $0x68] sm:$0xf]
    %v1717 = vld [vmem:[#allocation13 + $0x6c] sm:$0xf]
    %v1718 = vld [vmem:[#allocation13 + $0x70] sm:$0xf]
    %v1719 = vld [vmem:[#allocation13 + $0x74] sm:$0xf]
    %v1720 = vld [vmem:[#allocation13 + $0x78] sm:$0xf]
    %v1721 = vld [vmem:[#allocation13 + $0x7c] sm:$0xf]
    %v1722 = vld [vmem:[#allocation13 + $0x80] sm:$0xf]
    %v1723 = vld [vmem:[#allocation13 + $0x84] sm:$0xf]
    %v1724 = vld [vmem:[#allocation13 + $0x88] sm:$0xf]
    %v1725 = vld [vmem:[#allocation13 + $0x8c] sm:$0xf]
    %v1726 = vld [vmem:[#allocation13 + $0x90] sm:$0xf]
    %v1727 = vld [vmem:[#allocation13 + $0x94] sm:$0xf]
    %v1728 = vld [vmem:[#allocation13 + $0x98] sm:$0xf]
    %v1729 = vld [vmem:[#allocation13 + $0x9c] sm:$0xf]
    %v1730 = vld [vmem:[#allocation13 + $0xa0] sm:$0xf]
    %v1731 = vld [vmem:[#allocation13 + $0xa4] sm:$0xf]
    %v1732 = vld [vmem:[#allocation13 + $0xa8] sm:$0xf]
    %v1733 = vld [vmem:[#allocation13 + $0xac] sm:$0xf]
    %v1734 = vld [vmem:[#allocation13 + $0xb0] sm:$0xf]
    %v1735 = vld [vmem:[#allocation13 + $0xb4] sm:$0xf]
    %v1736 = vld [vmem:[#allocation13 + $0xb8] sm:$0xf]
    %v1737 = vld [vmem:[#allocation13 + $0xbc] sm:$0xf]
    %v1738 = vld [vmem:[#allocation13 + $0xc0] sm:$0xf]
    %v1739 = vld [vmem:[#allocation13 + $0xc4] sm:$0xf]
    %v1740 = vld [vmem:[#allocation13 + $0xc8] sm:$0xf]
    %v1741 = vld [vmem:[#allocation13 + $0xcc] sm:$0xf]
    %v1742 = vld [vmem:[#allocation13 + $0xd0] sm:$0xf]
    %v1743 = vld [vmem:[#allocation13 + $0xd4] sm:$0xf]
    %v1744 = vld [vmem:[#allocation13 + $0xd8] sm:$0xf]
    %v1745 = vld [vmem:[#allocation13 + $0xdc] sm:$0xf]
    %v1746 = vld [vmem:[#allocation13 + $0xe0] sm:$0xf]
    %v1747 = vld [vmem:[#allocation13 + $0xe4] sm:$0xf]
    %v1748 = vld [vmem:[#allocation13 + $0xe8] sm:$0xf]
    %v1749 = vld [vmem:[#allocation13 + $0xec] sm:$0xf]
    %v1750 = vld [vmem:[#allocation13 + $0xf0] sm:$0xf]
    %v1751 = vld [vmem:[#allocation13 + $0xf4] sm:$0xf]
    %v1752 = vld [vmem:[#allocation13 + $0xf8] sm:$0xf]
    %v1753 = vld [vmem:[#allocation13 + $0xfc] sm:$0xf]
    %v1754 = vld [vmem:[%s8] sm:$0x1]
    %v1756 = vlaneseq
    %v1757 = vshrl.u32 %v1756, 7
    %v1758 = vsub.s32 0, %v1757
    %v1759 = vrot.slane %v1754, %v1758
    %v1825 = vunpack.c.l.b16 %v1690
    %v1826 = vunpack.c.l.b16 %v1691
    %v1827 = vunpack.c.l.b16 %v1692
    %v1828 = vunpack.c.l.b16 %v1693
    %v1829 = vunpack.c.l.b16 %v1694
    %v1830 = vunpack.c.l.b16 %v1695
    %v1831 = vunpack.c.l.b16 %v1696
    %v1832 = vunpack.c.l.b16 %v1697
    %v1833 = vunpack.c.l.b16 %v1698
    %v1834 = vunpack.c.l.b16 %v1699
    %v1835 = vunpack.c.l.b16 %v1700
    %v1836 = vunpack.c.l.b16 %v1701
    %v1837 = vunpack.c.l.b16 %v1702
    %v1838 = vunpack.c.l.b16 %v1703
    %v1839 = vunpack.c.l.b16 %v1704
    %v1840 = vunpack.c.l.b16 %v1705
    %v1841 = vunpack.c.l.b16 %v1706
    %v1842 = vunpack.c.l.b16 %v1707
    %v1843 = vunpack.c.l.b16 %v1708
    %v1844 = vunpack.c.l.b16 %v1709
    %v1845 = vunpack.c.l.b16 %v1710
    %v1846 = vunpack.c.l.b16 %v1711
    %v1847 = vunpack.c.l.b16 %v1712
    %v1848 = vunpack.c.l.b16 %v1713
    %v1849 = vunpack.c.l.b16 %v1714
    %v1850 = vunpack.c.l.b16 %v1715
    %v1851 = vunpack.c.l.b16 %v1716
    %v1852 = vunpack.c.l.b16 %v1717
    %v1853 = vunpack.c.l.b16 %v1718
    %v1854 = vunpack.c.l.b16 %v1719
    %v1855 = vunpack.c.l.b16 %v1720
    %v1856 = vunpack.c.l.b16 %v1721
    %v1857 = vunpack.c.l.b16 %v1722
    %v1858 = vunpack.c.l.b16 %v1723
    %v1859 = vunpack.c.l.b16 %v1724
    %v1860 = vunpack.c.l.b16 %v1725
    %v1861 = vunpack.c.l.b16 %v1726
    %v1862 = vunpack.c.l.b16 %v1727
    %v1863 = vunpack.c.l.b16 %v1728
    %v1864 = vunpack.c.l.b16 %v1729
    %v1865 = vunpack.c.l.b16 %v1730
    %v1866 = vunpack.c.l.b16 %v1731
    %v1867 = vunpack.c.l.b16 %v1732
    %v1868 = vunpack.c.l.b16 %v1733
    %v1869 = vunpack.c.l.b16 %v1734
    %v1870 = vunpack.c.l.b16 %v1735
    %v1871 = vunpack.c.l.b16 %v1736
    %v1872 = vunpack.c.l.b16 %v1737
    %v1873 = vunpack.c.l.b16 %v1738
    %v1874 = vunpack.c.l.b16 %v1739
    %v1875 = vunpack.c.l.b16 %v1740
    %v1876 = vunpack.c.l.b16 %v1741
    %v1877 = vunpack.c.l.b16 %v1742
    %v1878 = vunpack.c.l.b16 %v1743
    %v1879 = vunpack.c.l.b16 %v1744
    %v1880 = vunpack.c.l.b16 %v1745
    %v1881 = vunpack.c.l.b16 %v1746
    %v1882 = vunpack.c.l.b16 %v1747
    %v1883 = vunpack.c.l.b16 %v1748
    %v1884 = vunpack.c.l.b16 %v1749
    %v1885 = vunpack.c.l.b16 %v1750
    %v1886 = vunpack.c.l.b16 %v1751
    %v1887 = vunpack.c.l.b16 %v1752
    %v1888 = vunpack.c.l.b16 %v1753
    %v1889 = vpack.c.b16 %v1826, %v1825
    %v1890 = vpack.c.b16 %v1828, %v1827
    %v1891 = vpack.c.b16 %v1830, %v1829
    %v1892 = vpack.c.b16 %v1832, %v1831
    %v1893 = vpack.c.b16 %v1834, %v1833
    %v1894 = vpack.c.b16 %v1836, %v1835
    %v1895 = vpack.c.b16 %v1838, %v1837
    %v1896 = vpack.c.b16 %v1840, %v1839
    %v1897 = vpack.c.b16 %v1842, %v1841
    %v1898 = vpack.c.b16 %v1844, %v1843
    %v1899 = vpack.c.b16 %v1846, %v1845
    %v1900 = vpack.c.b16 %v1848, %v1847
    %v1901 = vpack.c.b16 %v1850, %v1849
    %v1902 = vpack.c.b16 %v1852, %v1851
    %v1903 = vpack.c.b16 %v1854, %v1853
    %v1904 = vpack.c.b16 %v1856, %v1855
    %v1905 = vpack.c.b16 %v1858, %v1857
    %v1906 = vpack.c.b16 %v1860, %v1859
    %v1907 = vpack.c.b16 %v1862, %v1861
    %v1908 = vpack.c.b16 %v1864, %v1863
    %v1909 = vpack.c.b16 %v1866, %v1865
    %v1910 = vpack.c.b16 %v1868, %v1867
    %v1911 = vpack.c.b16 %v1870, %v1869
    %v1912 = vpack.c.b16 %v1872, %v1871
    %v1913 = vpack.c.b16 %v1874, %v1873
    %v1914 = vpack.c.b16 %v1876, %v1875
    %v1915 = vpack.c.b16 %v1878, %v1877
    %v1916 = vpack.c.b16 %v1880, %v1879
    %v1917 = vpack.c.b16 %v1882, %v1881
    %v1918 = vpack.c.b16 %v1884, %v1883
    %v1919 = vpack.c.b16 %v1886, %v1885
    %v1920 = vpack.c.b16 %v1888, %v1887
    %1953 = vmatprep.subr.bf16.mxu0 0
    %1954 = vmatpush1.bf16.msra.mxu0 %v1889
    %1955 = vmatprep.subr.bf16.mxu0 0
    %1956 = vmatpush1.bf16.msra.mxu0 %v1890
    %1957 = vmatprep.subr.bf16.mxu0 0
    %1958 = vmatpush1.bf16.msra.mxu0 %v1891
    %1959 = vmatprep.subr.bf16.mxu0 0
    %1960 = vmatpush1.bf16.msra.mxu0 %v1892
    %1961 = vmatprep.subr.bf16.mxu0 0
    %1962 = vmatpush1.bf16.msra.mxu0 %v1893
    %1963 = vmatprep.subr.bf16.mxu0 0
    %1964 = vmatpush1.bf16.msra.mxu0 %v1894
    %1965 = vmatprep.subr.bf16.mxu0 0
    %1966 = vmatpush1.bf16.msra.mxu0 %v1895
    %1967 = vmatprep.subr.bf16.mxu0 0
    %1968 = vmatpush1.bf16.msra.mxu0 %v1896
    %1969 = vmatprep.subr.bf16.mxu0 0
    %1970 = vmatpush1.bf16.msra.mxu0 %v1897
    %1971 = vmatprep.subr.bf16.mxu0 0
    %1972 = vmatpush1.bf16.msra.mxu0 %v1898
    %1973 = vmatprep.subr.bf16.mxu0 0
    %1974 = vmatpush1.bf16.msra.mxu0 %v1899
    %1975 = vmatprep.subr.bf16.mxu0 0
    %1976 = vmatpush1.bf16.msra.mxu0 %v1900
    %1977 = vmatprep.subr.bf16.mxu0 0
    %1978 = vmatpush1.bf16.msra.mxu0 %v1901
    %1979 = vmatprep.subr.bf16.mxu0 0
    %1980 = vmatpush1.bf16.msra.mxu0 %v1902
    %1981 = vmatprep.subr.bf16.mxu0 0
    %1982 = vmatpush1.bf16.msra.mxu0 %v1903
    %1983 = vmatprep.subr.bf16.mxu0 0
    %1984 = vmatpush1.bf16.msra.mxu0 %v1904
    %1985 = vmatprep.mubr.bf16.mxu0 %v1687
    %1986 = vmatmul.mubr.bf16.gmra.mrb[0].mxu0 %v1686
    %v1987 = vpop.f32.mrb[0].mxu0
    %v1988 = vadd.f32 %v1759, %v1987
    %v1989 = vpop.f32.mrb[0].mxu0
    %v1990 = vpop.f32.mrb[0].mxu0
    %v1991 = vpop.f32.mrb[0].mxu0
    %1992 = vdwg.mxu0
    %1993 = vmatprep.subr.bf16.mxu0 0
    %1994 = vmatpush1.bf16.msra.mxu0 %v1905
    %1995 = vmatprep.subr.bf16.mxu0 0
    %1996 = vmatpush1.bf16.msra.mxu0 %v1906
    %1997 = vmatprep.subr.bf16.mxu0 0
    %1998 = vmatpush1.bf16.msra.mxu0 %v1907
    %1999 = vmatprep.subr.bf16.mxu0 0
    %2000 = vmatpush1.bf16.msra.mxu0 %v1908
    %2001 = vmatprep.subr.bf16.mxu0 0
    %2002 = vmatpush1.bf16.msra.mxu0 %v1909
    %2003 = vmatprep.subr.bf16.mxu0 0
    %2004 = vmatpush1.bf16.msra.mxu0 %v1910
    %2005 = vmatprep.subr.bf16.mxu0 0
    %2006 = vmatpush1.bf16.msra.mxu0 %v1911
    %2007 = vmatprep.subr.bf16.mxu0 0
    %2008 = vmatpush1.bf16.msra.mxu0 %v1912
    %2009 = vmatprep.subr.bf16.mxu0 0
    %2010 = vmatpush1.bf16.msra.mxu0 %v1913
    %2011 = vmatprep.subr.bf16.mxu0 0
    %2012 = vmatpush1.bf16.msra.mxu0 %v1914
    %2013 = vmatprep.subr.bf16.mxu0 0
    %2014 = vmatpush1.bf16.msra.mxu0 %v1915
    %2015 = vmatprep.subr.bf16.mxu0 0
    %2016 = vmatpush1.bf16.msra.mxu0 %v1916
    %2017 = vmatprep.subr.bf16.mxu0 0
    %2018 = vmatpush1.bf16.msra.mxu0 %v1917
    %2019 = vmatprep.subr.bf16.mxu0 0
    %2020 = vmatpush1.bf16.msra.mxu0 %v1918
    %2021 = vmatprep.subr.bf16.mxu0 0
    %2022 = vmatpush1.bf16.msra.mxu0 %v1919
    %2023 = vmatprep.subr.bf16.mxu0 0
    %2024 = vmatpush1.bf16.msra.mxu0 %v1920
    %2025 = vmatprep.mubr.bf16.mxu0 %v1689
    %2026 = vmatmul.mubr.bf16.gmra.mrb[0].mxu0 %v1688
    %v2027 = vpop.f32.mrb[0].mxu0
    %v2028 = vadd.f32 %v1988, %v2027
    %v2029 = vpop.f32.mrb[0].mxu0
    %v2030 = vpop.f32.mrb[0].mxu0
    %v2031 = vpop.f32.mrb[0].mxu0
    %2032 = vdwg.mxu0
    %2033 = vst [vmem:[#allocation15] sm:$0x3] %v2028
    // Predicated region
    $region62: #{tpu_custom_call.1} parent=1 // pred_check
      _
    $region63: #{tpu_custom_call.1} parent=1 // pred_check_branch
      %2035 = sbr.rel (0) target = $region65
    $region64: #{tpu_custom_call.1} parent=1 // pred_region
      %s2037 = ssub.s32 32, 32
      %2038 = vsyncadd [#allocation6], %s2037
      %s2040 = sshll.u32 [#allocation15], 4
      %s2041 = int_to_ptr.vmem [resolvable:$true] %s2040
      %2043 = dma.vmem_to_hbm [thread:$0]  %s2041, 32, %s9, [#allocation6]
    $region65: #{tpu_custom_call.1} parent=1 // pred_fallthru
      _
    // Predicated region
    $region66: #{tpu_custom_call.1} parent=1 // pred_check
      _
    $region67: #{tpu_custom_call.1} parent=1 // pred_check_branch
      %2045 = sbr.rel (0) target = $region69
    $region68: #{tpu_custom_call.1} parent=1 // pred_region
      %2046 = dma.done [#allocation6], 32
    $region69: #{tpu_custom_call.1} parent=1 // pred_fallthru
      _
    %2047 = vsyncpa [#allocation5], 1
    %2048 = vsyncpa [#allocation8], 1
    %2049 = vsyncpa [#allocation11], 1
    %2050 = vsyncpa [#allocation14], 1
    %2051 = vsyncpa [#allocation6], 1

</llo_original>
